<compile_context>
chip_gen: v7x
topology: tpu7x:2x2x1
jax: 0.10.0
libtpu: 0.0.40
codegen_flags: <defaults>
</compile_context>

<pallas_src>
import functools

import jax
import jax.numpy as jnp
from jax.experimental import pallas as pl
from jax.experimental.pallas import tpu as pltpu


def _round_up(v, m):
    return -(-v // m) * m


def _cdiv(a, b):
    return -(-a // b)


def _device_kind():
    try:
        return jax.devices()[0].device_kind.lower()
    except Exception:
        return ""


@functools.lru_cache(maxsize=1)
def _hw_config():
    """Generation-aware tile / VMEM-limit / compute-dtype defaults."""
    kind = _device_kind()
    if "v7" in kind:
        cfg = dict(tile_n=2048, vmem_limit=56 * 2**20, num_cores=2, bf16_compute=True)
    elif "v6" in kind:
        cfg = dict(tile_n=2048, vmem_limit=96 * 2**20, num_cores=1, bf16_compute=True)
    elif ("v5 lite" in kind) or ("v5e" in kind) or ("v5litepod" in kind):
        # v5e: no bf16 VPU/EUP -> keep f32 elementwise path.
        cfg = dict(tile_n=2048, vmem_limit=96 * 2**20, num_cores=1, bf16_compute=False)
    else:
        # Unknown / older generation: conservative settings.
        cfg = dict(tile_n=1024, vmem_limit=48 * 2**20, num_cores=1, bf16_compute=False)
    try:
        cap = int(pltpu.get_tpu_info().vmem_capacity_bytes)
        cfg["vmem_limit"] = min(cfg["vmem_limit"], max(cap - 8 * 2**20, 16 * 2**20))
    except Exception:
        pass
    return cfg


def _default_compute_dtype():
    return jnp.bfloat16 if _hw_config()["bf16_compute"] else jnp.float32


def _glo_kernel(x_ref,
                w1_ref, b1_ref,
                w2_ref, b2_ref,
                w3_ref, b3_ref,
                w4_ref, b4_ref,
                w5_ref, b5_ref,
                o_ref, *, compute_dtype):
    """One tile of points through the full 5-layer MLP + sigmoid."""
    f32 = jnp.float32
    cdt = compute_dtype

    # ---- Layer 1 (3 -> m).  K=3 would waste a whole MXU pass, so compute it
    # on the VPU as three broadcast FMAs.  Math in the compute dtype (bf16 on
    # v6e/v7x which have a bf16 VALU, f32 on v5e).
    x = x_ref[...].astype(cdt)                                   # (tile, 3)
    w1 = w1_ref[...].astype(cdt)                                 # (3, m)
    h = (x[:, 0:1] * w1[0:1, :]
         + x[:, 1:2] * w1[1:2, :]
         + x[:, 2:3] * w1[2:3, :]
         + b1_ref[...])                                          # (tile, m)
    h = jnp.maximum(h, 0.0)

    # ---- Layers 2-4 (m -> m): bf16 MXU inputs, f32 accumulation, fused
    # epilogue (cast + bias + ReLU) in one pass over h.
    for w_ref, b_ref in ((w2_ref, b2_ref), (w3_ref, b3_ref), (w4_ref, b4_ref)):
        acc = jnp.dot(h.astype(w_ref.dtype), w_ref[...],
                      preferred_element_type=f32)                # (tile, m) f32
        h = jnp.maximum(acc.astype(cdt) + b_ref[...], 0.0)

    # ---- Layer 5 (m -> 1).  A (tile, m) @ (m, 1) dot wastes 127/128 of the
    # MXU output columns; a VPU multiply + lane (XLU) reduction uses slots that
    # are otherwise idle.  Reduction in f32 for accuracy.
    w5 = w5_ref[...].astype(f32)                                 # (1, m)
    y = jnp.sum(h.astype(f32) * w5, axis=-1, keepdims=True)      # (tile, 1)
    y = y + b5_ref[...].astype(f32)
    o_ref[...] = jax.nn.sigmoid(y).astype(o_ref.dtype)


@functools.partial(jax.jit,
                   static_argnames=("tile_n", "weight_dtype", "compute_dtype",
                                    "vmem_limit_bytes", "num_cores"))
def _glo_forward_impl(x, params, *, tile_n, weight_dtype, compute_dtype,
                      vmem_limit_bytes, num_cores):
    (w1, b1), (w2, b2), (w3, b3), (w4, b4), (w5, b5) = params
    m_dim = w1.shape[1]
    f32 = jnp.float32
    cdt = compute_dtype

    lead_shape = x.shape[:-1]
    n = 1
    for d in lead_shape:
        n *= d
    x2 = x.reshape(n, 3)

    # Tile selection: large tiles amortize the ~0.35 us per-grid-step overhead
    # and fill the MXU M dimension; adapt down for small N (single ragged
    # block); ensure >= num_cores steps on multi-TC chips (v7x) when N is
    # large enough for the split to matter.
    if n <= tile_n:
        tile = _round_up(max(n, 1), 8)
    else:
        tile = _round_up(tile_n, 128)
    if num_cores > 1 and n > 1024 and _cdiv(n, tile) < num_cores:
        tile = _round_up(_cdiv(n, num_cores), 128)
    num_tiles = _cdiv(n, tile)

    # Weights in bf16 (halves VMEM + vld traffic); biases in the compute dtype
    # so the whole epilogue stays in one dtype.  w5 as a row vector for the
    # VPU/XLU layer-5 path.
    w1c = w1.astype(weight_dtype)
    w2c = w2.astype(weight_dtype)
    w3c = w3.astype(weight_dtype)
    w4c = w4.astype(weight_dtype)
    w5c = w5.reshape(1, m_dim).astype(weight_dtype)
    b1r = b1.reshape(1, m_dim).astype(cdt)
    b2r = b2.reshape(1, m_dim).astype(cdt)
    b3r = b3.reshape(1, m_dim).astype(cdt)
    b4r = b4.reshape(1, m_dim).astype(cdt)
    b5r = b5.reshape(1, 1).astype(cdt)

    w_bytes = jnp.dtype(weight_dtype).itemsize
    b_bytes = jnp.dtype(cdt).itemsize
    flops_per_pt = 2 * (3 * m_dim + 3 * m_dim * m_dim + m_dim)
    cost = pl.CostEstimate(
        flops=n * flops_per_pt,
        transcendentals=n,                       # one sigmoid per point
        bytes_accessed=(n * 3 * 4 + n * 4
                        + (3 * m_dim + 3 * m_dim * m_dim + m_dim) * w_bytes
                        + (4 * m_dim + 1) * b_bytes))

    def res(shape):
        # Constant index_map: weights/biases are resident (DMA'd only once).
        return pl.BlockSpec(shape, lambda i: (0, 0))

    kernel = functools.partial(_glo_kernel, compute_dtype=cdt)

    out = pl.pallas_call(
        kernel,
        out_shape=jax.ShapeDtypeStruct((n, 1), f32),
        grid_spec=pltpu.PrefetchScalarGridSpec(
            num_scalar_prefetch=0,
            grid=(num_tiles,),
            in_specs=[
                pl.BlockSpec((tile, 3), lambda i: (i, 0)),   # x tile (pipelined)
                res((3, m_dim)), res((1, m_dim)),            # W1, b1
                res((m_dim, m_dim)), res((1, m_dim)),        # W2, b2
                res((m_dim, m_dim)), res((1, m_dim)),        # W3, b3
                res((m_dim, m_dim)), res((1, m_dim)),        # W4, b4
                res((1, m_dim)), res((1, 1)),                # W5 (row), b5
            ],
            out_specs=pl.BlockSpec((tile, 1), lambda i: (i, 0)),
        ),
        compiler_params=pltpu.CompilerParams(
            dimension_semantics=("parallel",),               # megacore sharding
            vmem_limit_bytes=vmem_limit_bytes),
        cost_estimate=cost,
    )(x2, w1c, b1r, w2c, b2r, w3c, b3r, w4c, b4r, w5c, b5r)

    return out.reshape(*lead_shape, 1)


def glo_forward(x, params, *, tile_n=None, weight_dtype=jnp.bfloat16,
                compute_dtype=None):
    """x: (..., 3) float32.  Returns (..., 1) float32 (same as the torch module)."""
    cfg = _hw_config()
    if tile_n is None:
        tile_n = cfg["tile_n"]
    if compute_dtype is None:
        compute_dtype = _default_compute_dtype()
    return _glo_forward_impl(
        x, params,
        tile_n=int(tile_n),
        weight_dtype=weight_dtype,
        compute_dtype=compute_dtype,
        vmem_limit_bytes=int(cfg["vmem_limit"]),
        num_cores=int(cfg["num_cores"]))


def init_glo_params(key, m_dim=1024, dtype=jnp.float32):
    """Deterministic init mimicking torch.nn.Linear defaults
    (uniform(-1/sqrt(fan_in), 1/sqrt(fan_in)) for both W and b)."""
    dims = [(3, m_dim), (m_dim, m_dim), (m_dim, m_dim), (m_dim, m_dim), (m_dim, 1)]
    params = []
    for (fan_in, fan_out) in dims:
        key, kw, kb = jax.random.split(key, 3)
        bound = 1.0 / (fan_in ** 0.5)
        w = jax.random.uniform(kw, (fan_in, fan_out), dtype, -bound, bound)
        b = jax.random.uniform(kb, (fan_out,), dtype, -bound, bound)
        params.append((w, b))
    return params


def glo_reference(x, params, weight_dtype=jnp.bfloat16, compute_dtype=jnp.float32):
    """Pure-JAX reference mirroring the kernel's numerics (bf16 weights,
    compute-dtype elementwise/activations, f32 MXU accumulation, f32 layer 5)."""
    (w1, b1), (w2, b2), (w3, b3), (w4, b4), (w5, b5) = params
    f32 = jnp.float32
    cdt = compute_dtype
    lead_shape = x.shape[:-1]

    xf = x.reshape(-1, 3).astype(cdt)
    w1c = w1.astype(weight_dtype).astype(cdt)
    h = (xf[:, 0:1] * w1c[0:1, :]
         + xf[:, 1:2] * w1c[1:2, :]
         + xf[:, 2:3] * w1c[2:3, :]
         + b1.reshape(1, -1).astype(cdt))
    h = jnp.maximum(h, 0.0)

    for w, b in ((w2, b2), (w3, b3), (w4, b4)):
        acc = jnp.dot(h.astype(weight_dtype), w.astype(weight_dtype),
                      preferred_element_type=f32)
        h = jnp.maximum(acc.astype(cdt) + b.reshape(1, -1).astype(cdt), 0.0)

    w5c = w5.reshape(1, -1).astype(weight_dtype).astype(f32)
    y = jnp.sum(h.astype(f32) * w5c, axis=-1, keepdims=True)
    y = y + b5.reshape(1, 1).astype(f32)
    return jax.nn.sigmoid(y).reshape(*lead_shape, 1)


if __name__ == "__main__":
    key = jax.random.PRNGKey(0)
    k_param, k_x1, k_x2 = jax.random.split(key, 3)

    m_dim = 128                       # small stand-in for the module default 1024
    params = init_glo_params(k_param, m_dim=m_dim)
    cdt = _default_compute_dtype()    # same compute dtype the kernel will pick

    # Case 1: batched 3-D points, single (adapted-down) tile.
    x1 = jax.random.normal(k_x1, (2, 100, 3), dtype=jnp.float32)
    y1 = jax.block_until_ready(glo_forward(x1, params))
    y1_ref = glo_reference(x1, params, compute_dtype=cdt)
    assert y1.shape == (2, 100, 1), y1.shape
    err1 = float(jnp.max(jnp.abs(y1 - y1_ref)))
    assert jnp.allclose(y1, y1_ref, atol=3e-3, rtol=3e-3), f"case1 mismatch: {err1}"

    # Case 2: forces a multi-step grid with a ragged last block (600 % 256 != 0).
    x2 = jax.random.normal(k_x2, (600, 3), dtype=jnp.float32)
    y2 = jax.block_until_ready(glo_forward(x2, params, tile_n=256))
    y2_ref = glo_reference(x2, params, compute_dtype=cdt)
    assert y2.shape == (600, 1), y2.shape
    err2 = float(jnp.max(jnp.abs(y2 - y2_ref)))
    assert jnp.allclose(y2, y2_ref, atol=3e-3, rtol=3e-3), f"case2 mismatch: {err2}"

    print("KERNEL_OK")
</pallas_src>

<mosaic_0001>
module attributes {stable_mosaic.version = 11 : i64} {
  func.func @_glo_kernel(%arg0: i32, %arg1: memref<200x3xf32, #tpu.memory_space<vmem>>, %arg2: memref<3x128xbf16, #tpu.memory_space<vmem>>, %arg3: memref<1x128xf32, #tpu.memory_space<vmem>>, %arg4: memref<128x128xbf16, #tpu.memory_space<vmem>>, %arg5: memref<1x128xf32, #tpu.memory_space<vmem>>, %arg6: memref<128x128xbf16, #tpu.memory_space<vmem>>, %arg7: memref<1x128xf32, #tpu.memory_space<vmem>>, %arg8: memref<128x128xbf16, #tpu.memory_space<vmem>>, %arg9: memref<1x128xf32, #tpu.memory_space<vmem>>, %arg10: memref<1x128xbf16, #tpu.memory_space<vmem>>, %arg11: memref<1x1xf32, #tpu.memory_space<vmem>>, %arg12: memref<200x1xf32, #tpu.memory_space<vmem>>) attributes {dimension_semantics = [#tpu.dimension_semantics<parallel>], iteration_bounds = array<i64: 1>, scalar_prefetch = 0 : i64, scratch_operands = 0 : i64, tpu.core_type = #tpu.core_type<tc>, window_params = [{transform_indices = @transform_0, window_bounds = array<i64: 200, 3>}, {pipeline_mode = #tpu.pipeline_mode<synchronous>, transform_indices = @transform_1, window_bounds = array<i64: 3, 128>}, {pipeline_mode = #tpu.pipeline_mode<synchronous>, transform_indices = @transform_2, window_bounds = array<i64: 1, 128>}, {pipeline_mode = #tpu.pipeline_mode<synchronous>, transform_indices = @transform_3, window_bounds = array<i64: 128, 128>}, {pipeline_mode = #tpu.pipeline_mode<synchronous>, transform_indices = @transform_4, window_bounds = array<i64: 1, 128>}, {pipeline_mode = #tpu.pipeline_mode<synchronous>, transform_indices = @transform_5, window_bounds = array<i64: 128, 128>}, {pipeline_mode = #tpu.pipeline_mode<synchronous>, transform_indices = @transform_6, window_bounds = array<i64: 1, 128>}, {pipeline_mode = #tpu.pipeline_mode<synchronous>, transform_indices = @transform_7, window_bounds = array<i64: 128, 128>}, {pipeline_mode = #tpu.pipeline_mode<synchronous>, transform_indices = @transform_8, window_bounds = array<i64: 1, 128>}, {pipeline_mode = #tpu.pipeline_mode<synchronous>, transform_indices = @transform_9, window_bounds = array<i64: 1, 128>}, {pipeline_mode = #tpu.pipeline_mode<synchronous>, transform_indices = @transform_10, window_bounds = array<i64: 1, 1>}, {transform_indices = @transform_11, window_bounds = array<i64: 200, 1>}]} {
    %c0 = arith.constant 0 : index
    %c0_0 = arith.constant 0 : index
    %0 = vector.load %arg1[%c0, %c0_0] : memref<200x3xf32, #tpu.memory_space<vmem>>, vector<200x3xf32>
    %c0_1 = arith.constant 0 : index
    %c0_2 = arith.constant 0 : index
    %1 = vector.load %arg2[%c0_1, %c0_2] : memref<3x128xbf16, #tpu.memory_space<vmem>>, vector<3x128xbf16>
    %2 = arith.extf %1 : vector<3x128xbf16> to vector<3x128xf32>
    %3 = vector.extract_strided_slice %0 {offsets = [0, 0], sizes = [200, 1], strides = [1, 1]} : vector<200x3xf32> to vector<200x1xf32>
    %4 = vector.extract_strided_slice %2 {offsets = [0, 0], sizes = [1, 128], strides = [1, 1]} : vector<3x128xf32> to vector<1x128xf32>
    %5 = vector.broadcast %3 : vector<200x1xf32> to vector<200x128xf32>
    %6 = vector.broadcast %4 : vector<1x128xf32> to vector<200x128xf32>
    %7 = arith.mulf %5, %6 : vector<200x128xf32>
    %8 = vector.extract_strided_slice %0 {offsets = [0, 1], sizes = [200, 1], strides = [1, 1]} : vector<200x3xf32> to vector<200x1xf32>
    %9 = vector.extract_strided_slice %2 {offsets = [1, 0], sizes = [1, 128], strides = [1, 1]} : vector<3x128xf32> to vector<1x128xf32>
    %10 = vector.broadcast %8 : vector<200x1xf32> to vector<200x128xf32>
    %11 = vector.broadcast %9 : vector<1x128xf32> to vector<200x128xf32>
    %12 = arith.mulf %10, %11 : vector<200x128xf32>
    %13 = arith.addf %7, %12 : vector<200x128xf32>
    %14 = vector.extract_strided_slice %0 {offsets = [0, 2], sizes = [200, 1], strides = [1, 1]} : vector<200x3xf32> to vector<200x1xf32>
    %15 = vector.extract_strided_slice %2 {offsets = [2, 0], sizes = [1, 128], strides = [1, 1]} : vector<3x128xf32> to vector<1x128xf32>
    %16 = vector.broadcast %14 : vector<200x1xf32> to vector<200x128xf32>
    %17 = vector.broadcast %15 : vector<1x128xf32> to vector<200x128xf32>
    %18 = arith.mulf %16, %17 : vector<200x128xf32>
    %19 = arith.addf %13, %18 : vector<200x128xf32>
    %c0_3 = arith.constant 0 : index
    %c0_4 = arith.constant 0 : index
    %20 = vector.load %arg3[%c0_3, %c0_4] : memref<1x128xf32, #tpu.memory_space<vmem>>, vector<1x128xf32>
    %21 = vector.broadcast %20 : vector<1x128xf32> to vector<200x128xf32>
    %22 = arith.addf %19, %21 : vector<200x128xf32>
    %cst = arith.constant 0.000000e+00 : f32
    %23 = vector.broadcast %cst : f32 to vector<200x128xf32>
    %24 = arith.maximumf %22, %23 : vector<200x128xf32>
    %25 = arith.truncf %24 : vector<200x128xf32> to vector<200x128xbf16>
    %c0_5 = arith.constant 0 : index
    %c0_6 = arith.constant 0 : index
    %26 = vector.load %arg4[%c0_5, %c0_6] : memref<128x128xbf16, #tpu.memory_space<vmem>>, vector<128x128xbf16>
    %cst_7 = arith.constant dense<0.000000e+00> : vector<200x128xf32>
    %27 = tpu.matmul %25, %26, %cst_7 {dimension_numbers = #tpu.dot_dimension_numbers<[1], [0], [0], [1], [0, 0, 1, 1], [], []>} : vector<200x128xbf16>, vector<128x128xbf16>, vector<200x128xf32> -> vector<200x128xf32>
    %c0_8 = arith.constant 0 : index
    %c0_9 = arith.constant 0 : index
    %28 = vector.load %arg5[%c0_8, %c0_9] : memref<1x128xf32, #tpu.memory_space<vmem>>, vector<1x128xf32>
    %29 = vector.broadcast %28 : vector<1x128xf32> to vector<200x128xf32>
    %30 = arith.addf %27, %29 : vector<200x128xf32>
    %cst_10 = arith.constant 0.000000e+00 : f32
    %31 = vector.broadcast %cst_10 : f32 to vector<200x128xf32>
    %32 = arith.maximumf %30, %31 : vector<200x128xf32>
    %33 = arith.truncf %32 : vector<200x128xf32> to vector<200x128xbf16>
    %c0_11 = arith.constant 0 : index
    %c0_12 = arith.constant 0 : index
    %34 = vector.load %arg6[%c0_11, %c0_12] : memref<128x128xbf16, #tpu.memory_space<vmem>>, vector<128x128xbf16>
    %cst_13 = arith.constant dense<0.000000e+00> : vector<200x128xf32>
    %35 = tpu.matmul %33, %34, %cst_13 {dimension_numbers = #tpu.dot_dimension_numbers<[1], [0], [0], [1], [0, 0, 1, 1], [], []>} : vector<200x128xbf16>, vector<128x128xbf16>, vector<200x128xf32> -> vector<200x128xf32>
    %c0_14 = arith.constant 0 : index
    %c0_15 = arith.constant 0 : index
    %36 = vector.load %arg7[%c0_14, %c0_15] : memref<1x128xf32, #tpu.memory_space<vmem>>, vector<1x128xf32>
    %37 = vector.broadcast %36 : vector<1x128xf32> to vector<200x128xf32>
    %38 = arith.addf %35, %37 : vector<200x128xf32>
    %cst_16 = arith.constant 0.000000e+00 : f32
    %39 = vector.broadcast %cst_16 : f32 to vector<200x128xf32>
    %40 = arith.maximumf %38, %39 : vector<200x128xf32>
    %41 = arith.truncf %40 : vector<200x128xf32> to vector<200x128xbf16>
    %c0_17 = arith.constant 0 : index
    %c0_18 = arith.constant 0 : index
    %42 = vector.load %arg8[%c0_17, %c0_18] : memref<128x128xbf16, #tpu.memory_space<vmem>>, vector<128x128xbf16>
    %cst_19 = arith.constant dense<0.000000e+00> : vector<200x128xf32>
    %43 = tpu.matmul %41, %42, %cst_19 {dimension_numbers = #tpu.dot_dimension_numbers<[1], [0], [0], [1], [0, 0, 1, 1], [], []>} : vector<200x128xbf16>, vector<128x128xbf16>, vector<200x128xf32> -> vector<200x128xf32>
    %c0_20 = arith.constant 0 : index
    %c0_21 = arith.constant 0 : index
    %44 = vector.load %arg9[%c0_20, %c0_21] : memref<1x128xf32, #tpu.memory_space<vmem>>, vector<1x128xf32>
    %45 = vector.broadcast %44 : vector<1x128xf32> to vector<200x128xf32>
    %46 = arith.addf %43, %45 : vector<200x128xf32>
    %cst_22 = arith.constant 0.000000e+00 : f32
    %47 = vector.broadcast %cst_22 : f32 to vector<200x128xf32>
    %48 = arith.maximumf %46, %47 : vector<200x128xf32>
    %c0_23 = arith.constant 0 : index
    %c0_24 = arith.constant 0 : index
    %49 = vector.load %arg10[%c0_23, %c0_24] : memref<1x128xbf16, #tpu.memory_space<vmem>>, vector<1x128xbf16>
    %50 = arith.extf %49 : vector<1x128xbf16> to vector<1x128xf32>
    %51 = vector.broadcast %50 : vector<1x128xf32> to vector<200x128xf32>
    %52 = arith.mulf %48, %51 : vector<200x128xf32>
    %cst_25 = arith.constant dense<0.000000e+00> : vector<200xf32>
    %53 = vector.multi_reduction <add>, %52, %cst_25 [1] : vector<200x128xf32> to vector<200xf32>
    %54 = vector.shape_cast %53 : vector<200xf32> to vector<200x1xf32>
    %c0_26 = arith.constant 0 : index
    %c0_27 = arith.constant 0 : index
    %55 = vector.load %arg11[%c0_26, %c0_27] : memref<1x1xf32, #tpu.memory_space<vmem>>, vector<1x1xf32>
    %56 = vector.broadcast %55 : vector<1x1xf32> to vector<200x1xf32>
    %57 = arith.addf %54, %56 : vector<200x1xf32>
    %58 = arith.negf %57 : vector<200x1xf32>
    %59 = math.exp %58 : vector<200x1xf32>
    %cst_28 = arith.constant 1.000000e+00 : f32
    %60 = vector.broadcast %cst_28 : f32 to vector<200x1xf32>
    %61 = arith.addf %60, %59 : vector<200x1xf32>
    %62 = arith.divf %60, %61 : vector<200x1xf32>
    %c0_29 = arith.constant 0 : index
    %c0_30 = arith.constant 0 : index
    %63 = vector.load %arg12[%c0_29, %c0_30] : memref<200x1xf32, #tpu.memory_space<vmem>>, vector<200x1xf32>
    tpu.vector_store %arg12[%c0_29, %c0_30], %62 {strides = array<i32>} : memref<200x1xf32, #tpu.memory_space<vmem>>, vector<200x1xf32>,
    return
  }
  func.func @transform_0(%arg0: i32) -> (i32, i32) {
    %c0_i32 = arith.constant 0 : i32
    %c0_i32_0 = arith.constant 0 : i32
    return %arg0, %c0_i32 : i32, i32
  }
  func.func @transform_1(%arg0: i32) -> (i32, i32) {
    %c0_i32 = arith.constant 0 : i32
    %c0_i32_0 = arith.constant 0 : i32
    %c0_i32_1 = arith.constant 0 : i32
    return %c0_i32, %c0_i32_0 : i32, i32
  }
  func.func @transform_2(%arg0: i32) -> (i32, i32) {
    %c0_i32 = arith.constant 0 : i32
    %c0_i32_0 = arith.constant 0 : i32
    %c0_i32_1 = arith.constant 0 : i32
    return %c0_i32, %c0_i32_0 : i32, i32
  }
  func.func @transform_3(%arg0: i32) -> (i32, i32) {
    %c0_i32 = arith.constant 0 : i32
    %c0_i32_0 = arith.constant 0 : i32
    %c0_i32_1 = arith.constant 0 : i32
    return %c0_i32, %c0_i32_0 : i32, i32
  }
  func.func @transform_4(%arg0: i32) -> (i32, i32) {
    %c0_i32 = arith.constant 0 : i32
    %c0_i32_0 = arith.constant 0 : i32
    %c0_i32_1 = arith.constant 0 : i32
    return %c0_i32, %c0_i32_0 : i32, i32
  }
  func.func @transform_5(%arg0: i32) -> (i32, i32) {
    %c0_i32 = arith.constant 0 : i32
    %c0_i32_0 = arith.constant 0 : i32
    %c0_i32_1 = arith.constant 0 : i32
    return %c0_i32, %c0_i32_0 : i32, i32
  }
  func.func @transform_6(%arg0: i32) -> (i32, i32) {
    %c0_i32 = arith.constant 0 : i32
    %c0_i32_0 = arith.constant 0 : i32
    %c0_i32_1 = arith.constant 0 : i32
    return %c0_i32, %c0_i32_0 : i32, i32
  }
  func.func @transform_7(%arg0: i32) -> (i32, i32) {
    %c0_i32 = arith.constant 0 : i32
    %c0_i32_0 = arith.constant 0 : i32
    %c0_i32_1 = arith.constant 0 : i32
    return %c0_i32, %c0_i32_0 : i32, i32
  }
  func.func @transform_8(%arg0: i32) -> (i32, i32) {
    %c0_i32 = arith.constant 0 : i32
    %c0_i32_0 = arith.constant 0 : i32
    %c0_i32_1 = arith.constant 0 : i32
    return %c0_i32, %c0_i32_0 : i32, i32
  }
  func.func @transform_9(%arg0: i32) -> (i32, i32) {
    %c0_i32 = arith.constant 0 : i32
    %c0_i32_0 = arith.constant 0 : i32
    %c0_i32_1 = arith.constant 0 : i32
    return %c0_i32, %c0_i32_0 : i32, i32
  }
  func.func @transform_10(%arg0: i32) -> (i32, i32) {
    %c0_i32 = arith.constant 0 : i32
    %c0_i32_0 = arith.constant 0 : i32
    %c0_i32_1 = arith.constant 0 : i32
    return %c0_i32, %c0_i32_0 : i32, i32
  }
  func.func @transform_11(%arg0: i32) -> (i32, i32) {
    %c0_i32 = arith.constant 0 : i32
    %c0_i32_0 = arith.constant 0 : i32
    return %arg0, %c0_i32 : i32, i32
  }
}

</mosaic_0001>

<llo_original>
// kernel: _glo_forward_impl.1
$region0: #{_glo_forward_impl.1}
  #allocation0 [shape = 'u32[]', space=smem, size = 0x4, offset = 0x4, fixed_abs, tag = 'smem constant byte address 0x4 - core index']
  #allocation1 [shape = 'u32[144,128]{1,0:T(1,128)}', space=vmem, size = 0x12000, scoped, tag = 'internal scratch']
  #allocation2 [shape = 'f32[1,1]{1,0:T(1,128)S(1)}', space=vmem, size = 0x200, scoped, tag = 'scoped memory for _glo_forward_impl.1']
  %s0 = inlined_call_operand.vmem [shape: f32[200,3], index: 0, kind: input, shape index: {}]
  %s1 = inlined_call_operand.vmem [shape: bf16[3,128], index: 1, kind: input, shape index: {}]
  %s2 = inlined_call_operand.vmem [shape: f32[1,128], index: 2, kind: input, shape index: {}]
  %s3 = inlined_call_operand.vmem [shape: bf16[128,128], index: 3, kind: input, shape index: {}]
  %s4 = inlined_call_operand.vmem [shape: f32[1,128], index: 4, kind: input, shape index: {}]
  %s5 = inlined_call_operand.vmem [shape: bf16[128,128], index: 5, kind: input, shape index: {}]
  %s6 = inlined_call_operand.vmem [shape: f32[1,128], index: 6, kind: input, shape index: {}]
  %s7 = inlined_call_operand.vmem [shape: bf16[128,128], index: 7, kind: input, shape index: {}]
  %s8 = inlined_call_operand.vmem [shape: f32[1,128], index: 8, kind: input, shape index: {}]
  %s9 = inlined_call_operand.vmem [shape: bf16[1,128], index: 9, kind: input, shape index: {}]
  %s10 = inlined_call_operand.<no memory space> [shape: f32[1,1], index: 10, kind: input, shape index: {}]
  %s11 = inlined_call_operand.vmem [shape: f32[200,1], index: 11, kind: output, shape index: {}]
  %s12 = sld [smem:[#allocation0]]
  $region54: #{_glo_forward_impl.1} parent=0
    _
  %s14 = ssub.s32 1, %s12
  %s15 = scalar_select 0, %s14, %s12
  %v16 = vstv %s10
  %17 = vst [vmem:[#allocation2] sm:$0x1] %v16
  // Predicated region
  $region2: #{_glo_forward_impl.1} parent=0 // pred_check
    _
  $region3: #{_glo_forward_impl.1} parent=0 // pred_check_branch
    %19 = sbr.rel (0) target = $region5
  $region4: #{_glo_forward_impl.1} parent=0 // pred_region
    _
  $region5: #{_glo_forward_impl.1} parent=0 // pred_fallthru
    _
  // Predicated region
  $region6: #{_glo_forward_impl.1} parent=0 // pred_check
    _
  $region7: #{_glo_forward_impl.1} parent=0 // pred_check_branch
    %21 = sbr.rel (0) target = $region9
  $region8: #{_glo_forward_impl.1} parent=0 // pred_region
    _
  $region9: #{_glo_forward_impl.1} parent=0 // pred_fallthru
    _
  // Predicated region
  $region10: #{_glo_forward_impl.1} parent=0 // pred_check
    _
  $region11: #{_glo_forward_impl.1} parent=0 // pred_check_branch
    %23 = sbr.rel (0) target = $region13
  $region12: #{_glo_forward_impl.1} parent=0 // pred_region
    _
  $region13: #{_glo_forward_impl.1} parent=0 // pred_fallthru
    _
  // Predicated region
  $region14: #{_glo_forward_impl.1} parent=0 // pred_check
    _
  $region15: #{_glo_forward_impl.1} parent=0 // pred_check_branch
    %25 = sbr.rel (0) target = $region17
  $region16: #{_glo_forward_impl.1} parent=0 // pred_region
    _
  $region17: #{_glo_forward_impl.1} parent=0 // pred_fallthru
    _
  // Predicated region
  $region18: #{_glo_forward_impl.1} parent=0 // pred_check
    _
  $region19: #{_glo_forward_impl.1} parent=0 // pred_check_branch
    %27 = sbr.rel (0) target = $region21
  $region20: #{_glo_forward_impl.1} parent=0 // pred_region
    _
  $region21: #{_glo_forward_impl.1} parent=0 // pred_fallthru
    _
  // Predicated region
  $region22: #{_glo_forward_impl.1} parent=0 // pred_check
    _
  $region23: #{_glo_forward_impl.1} parent=0 // pred_check_branch
    %29 = sbr.rel (0) target = $region25
  $region24: #{_glo_forward_impl.1} parent=0 // pred_region
    _
  $region25: #{_glo_forward_impl.1} parent=0 // pred_fallthru
    _
  // Predicated region
  $region26: #{_glo_forward_impl.1} parent=0 // pred_check
    _
  $region27: #{_glo_forward_impl.1} parent=0 // pred_check_branch
    %31 = sbr.rel (0) target = $region29
  $region28: #{_glo_forward_impl.1} parent=0 // pred_region
    _
  $region29: #{_glo_forward_impl.1} parent=0 // pred_fallthru
    _
  // Predicated region
  $region30: #{_glo_forward_impl.1} parent=0 // pred_check
    _
  $region31: #{_glo_forward_impl.1} parent=0 // pred_check_branch
    %33 = sbr.rel (0) target = $region33
  $region32: #{_glo_forward_impl.1} parent=0 // pred_region
    _
  $region33: #{_glo_forward_impl.1} parent=0 // pred_fallthru
    _
  // Predicated region
  $region34: #{_glo_forward_impl.1} parent=0 // pred_check
    _
  $region35: #{_glo_forward_impl.1} parent=0 // pred_check_branch
    %35 = sbr.rel (0) target = $region37
  $region36: #{_glo_forward_impl.1} parent=0 // pred_region
    _
  $region37: #{_glo_forward_impl.1} parent=0 // pred_fallthru
    _
  // Predicated region
  $region38: #{_glo_forward_impl.1} parent=0 // pred_check
    _
  $region39: #{_glo_forward_impl.1} parent=0 // pred_check_branch
    %37 = sbr.rel (0) target = $region41
  $region40: #{_glo_forward_impl.1} parent=0 // pred_region
    _
  $region41: #{_glo_forward_impl.1} parent=0 // pred_fallthru
    _
  // Predicated region
  $region42: #{_glo_forward_impl.1} parent=0 // pred_check
    _
  $region43: #{_glo_forward_impl.1} parent=0 // pred_check_branch
    %39 = sbr.rel (0) target = $region45
  $region44: #{_glo_forward_impl.1} parent=0 // pred_region
    _
  $region45: #{_glo_forward_impl.1} parent=0 // pred_fallthru
    _
  %v41 = vld [vmem:[%s0] sm:$0xff]
  %v42 = vld [vmem:[%s0 + $0x8] sm:$0xff]
  %v43 = vld [vmem:[%s0 + $0x10] sm:$0xff]
  %v44 = vld [vmem:[%s0 + $0x18] sm:$0xff]
  %v45 = vld [vmem:[%s0 + $0x20] sm:$0xff]
  %v46 = vld [vmem:[%s0 + $0x28] sm:$0xff]
  %v47 = vld [vmem:[%s0 + $0x30] sm:$0xff]
  %v48 = vld [vmem:[%s0 + $0x38] sm:$0xff]
  %v49 = vld [vmem:[%s0 + $0x40] sm:$0xff]
  %v50 = vld [vmem:[%s0 + $0x48] sm:$0xff]
  %v51 = vld [vmem:[%s0 + $0x50] sm:$0xff]
  %v52 = vld [vmem:[%s0 + $0x58] sm:$0xff]
  %v53 = vld [vmem:[%s0 + $0x60] sm:$0xff]
  %v54 = vld [vmem:[%s0 + $0x68] sm:$0xff]
  %v55 = vld [vmem:[%s0 + $0x70] sm:$0xff]
  %v56 = vld [vmem:[%s0 + $0x78] sm:$0xff]
  %v57 = vld [vmem:[%s0 + $0x80] sm:$0xff]
  %v58 = vld [vmem:[%s0 + $0x88] sm:$0xff]
  %v59 = vld [vmem:[%s0 + $0x90] sm:$0xff]
  %v60 = vld [vmem:[%s0 + $0x98] sm:$0xff]
  %v61 = vld [vmem:[%s0 + $0xa0] sm:$0xff]
  %v62 = vld [vmem:[%s0 + $0xa8] sm:$0xff]
  %v63 = vld [vmem:[%s0 + $0xb0] sm:$0xff]
  %v64 = vld [vmem:[%s0 + $0xb8] sm:$0xff]
  %v65 = vld [vmem:[%s0 + $0xc0] sm:$0xff]
  %v66 = vld [vmem:[%s1] sm:$0x3]
  %v67 = vunpack.c.l.bf16 %v66
  %69 = vset.pattern.permute.xlu0 0
  %70 = vperm.xlu0 %69, %v41
  %v71 = vpop.permute.xlu0 %70
  %74 = vset.pattern.permute.xlu0 0
  %75 = vperm.xlu0 %74, %v42
  %v76 = vpop.permute.xlu0 %75
  %79 = vset.pattern.permute.xlu0 0
  %80 = vperm.xlu0 %79, %v43
  %v81 = vpop.permute.xlu0 %80
  %84 = vset.pattern.permute.xlu0 0
  %85 = vperm.xlu0 %84, %v44
  %v86 = vpop.permute.xlu0 %85
  %89 = vset.pattern.permute.xlu0 0
  %90 = vperm.xlu0 %89, %v45
  %v91 = vpop.permute.xlu0 %90
  %94 = vset.pattern.permute.xlu0 0
  %95 = vperm.xlu0 %94, %v46
  %v96 = vpop.permute.xlu0 %95
  %99 = vset.pattern.permute.xlu0 0
  %100 = vperm.xlu0 %99, %v47
  %v101 = vpop.permute.xlu0 %100
  %104 = vset.pattern.permute.xlu0 0
  %105 = vperm.xlu0 %104, %v48
  %v106 = vpop.permute.xlu0 %105
  %109 = vset.pattern.permute.xlu0 0
  %110 = vperm.xlu0 %109, %v49
  %v111 = vpop.permute.xlu0 %110
  %114 = vset.pattern.permute.xlu0 0
  %115 = vperm.xlu0 %114, %v50
  %v116 = vpop.permute.xlu0 %115
  %119 = vset.pattern.permute.xlu0 0
  %120 = vperm.xlu0 %119, %v51
  %v121 = vpop.permute.xlu0 %120
  %124 = vset.pattern.permute.xlu0 0
  %125 = vperm.xlu0 %124, %v52
  %v126 = vpop.permute.xlu0 %125
  %129 = vset.pattern.permute.xlu0 0
  %130 = vperm.xlu0 %129, %v53
  %v131 = vpop.permute.xlu0 %130
  %134 = vset.pattern.permute.xlu0 0
  %135 = vperm.xlu0 %134, %v54
  %v136 = vpop.permute.xlu0 %135
  %139 = vset.pattern.permute.xlu0 0
  %140 = vperm.xlu0 %139, %v55
  %v141 = vpop.permute.xlu0 %140
  %144 = vset.pattern.permute.xlu0 0
  %145 = vperm.xlu0 %144, %v56
  %v146 = vpop.permute.xlu0 %145
  %149 = vset.pattern.permute.xlu0 0
  %150 = vperm.xlu0 %149, %v57
  %v151 = vpop.permute.xlu0 %150
  %154 = vset.pattern.permute.xlu0 0
  %155 = vperm.xlu0 %154, %v58
  %v156 = vpop.permute.xlu0 %155
  %159 = vset.pattern.permute.xlu0 0
  %160 = vperm.xlu0 %159, %v59
  %v161 = vpop.permute.xlu0 %160
  %164 = vset.pattern.permute.xlu0 0
  %165 = vperm.xlu0 %164, %v60
  %v166 = vpop.permute.xlu0 %165
  %169 = vset.pattern.permute.xlu0 0
  %170 = vperm.xlu0 %169, %v61
  %v171 = vpop.permute.xlu0 %170
  %174 = vset.pattern.permute.xlu0 0
  %175 = vperm.xlu0 %174, %v62
  %v176 = vpop.permute.xlu0 %175
  %179 = vset.pattern.permute.xlu0 0
  %180 = vperm.xlu0 %179, %v63
  %v181 = vpop.permute.xlu0 %180
  %184 = vset.pattern.permute.xlu0 0
  %185 = vperm.xlu0 %184, %v64
  %v186 = vpop.permute.xlu0 %185
  %189 = vset.pattern.permute.xlu0 0
  %190 = vperm.xlu0 %189, %v65
  %v191 = vpop.permute.xlu0 %190
  %v193 = vlaneseq
  %v194 = vshrl.u32 %v193, 7
  %v195 = vsub.s32 0, %v194
  %v196 = vrot.slane %v67, %v195
  %v197 = vmul.f32 %v71, %v196
  %v198 = vmul.f32 %v76, %v196
  %v199 = vmul.f32 %v81, %v196
  %v200 = vmul.f32 %v86, %v196
  %v201 = vmul.f32 %v91, %v196
  %v202 = vmul.f32 %v96, %v196
  %v203 = vmul.f32 %v101, %v196
  %v204 = vmul.f32 %v106, %v196
  %v205 = vmul.f32 %v111, %v196
  %v206 = vmul.f32 %v116, %v196
  %v207 = vmul.f32 %v121, %v196
  %v208 = vmul.f32 %v126, %v196
  %v209 = vmul.f32 %v131, %v196
  %v210 = vmul.f32 %v136, %v196
  %v211 = vmul.f32 %v141, %v196
  %v212 = vmul.f32 %v146, %v196
  %v213 = vmul.f32 %v151, %v196
  %v214 = vmul.f32 %v156, %v196
  %v215 = vmul.f32 %v161, %v196
  %v216 = vmul.f32 %v166, %v196
  %v217 = vmul.f32 %v171, %v196
  %v218 = vmul.f32 %v176, %v196
  %v219 = vmul.f32 %v181, %v196
  %v220 = vmul.f32 %v186, %v196
  %v221 = vmul.f32 %v191, %v196
  %222 = vset.pattern.permute.xlu0 1
  %223 = vperm.xlu0 %222, %v41
  %v224 = vpop.permute.xlu0 %223
  %226 = vset.pattern.permute.xlu0 1
  %227 = vperm.xlu0 %226, %v42
  %v228 = vpop.permute.xlu0 %227
  %230 = vset.pattern.permute.xlu0 1
  %231 = vperm.xlu0 %230, %v43
  %v232 = vpop.permute.xlu0 %231
  %234 = vset.pattern.permute.xlu0 1
  %235 = vperm.xlu0 %234, %v44
  %v236 = vpop.permute.xlu0 %235
  %238 = vset.pattern.permute.xlu0 1
  %239 = vperm.xlu0 %238, %v45
  %v240 = vpop.permute.xlu0 %239
  %242 = vset.pattern.permute.xlu0 1
  %243 = vperm.xlu0 %242, %v46
  %v244 = vpop.permute.xlu0 %243
  %246 = vset.pattern.permute.xlu0 1
  %247 = vperm.xlu0 %246, %v47
  %v248 = vpop.permute.xlu0 %247
  %250 = vset.pattern.permute.xlu0 1
  %251 = vperm.xlu0 %250, %v48
  %v252 = vpop.permute.xlu0 %251
  %254 = vset.pattern.permute.xlu0 1
  %255 = vperm.xlu0 %254, %v49
  %v256 = vpop.permute.xlu0 %255
  %258 = vset.pattern.permute.xlu0 1
  %259 = vperm.xlu0 %258, %v50
  %v260 = vpop.permute.xlu0 %259
  %262 = vset.pattern.permute.xlu0 1
  %263 = vperm.xlu0 %262, %v51
  %v264 = vpop.permute.xlu0 %263
  %266 = vset.pattern.permute.xlu0 1
  %267 = vperm.xlu0 %266, %v52
  %v268 = vpop.permute.xlu0 %267
  %270 = vset.pattern.permute.xlu0 1
  %271 = vperm.xlu0 %270, %v53
  %v272 = vpop.permute.xlu0 %271
  %274 = vset.pattern.permute.xlu0 1
  %275 = vperm.xlu0 %274, %v54
  %v276 = vpop.permute.xlu0 %275
  %278 = vset.pattern.permute.xlu0 1
  %279 = vperm.xlu0 %278, %v55
  %v280 = vpop.permute.xlu0 %279
  %282 = vset.pattern.permute.xlu0 1
  %283 = vperm.xlu0 %282, %v56
  %v284 = vpop.permute.xlu0 %283
  %286 = vset.pattern.permute.xlu0 1
  %287 = vperm.xlu0 %286, %v57
  %v288 = vpop.permute.xlu0 %287
  %290 = vset.pattern.permute.xlu0 1
  %291 = vperm.xlu0 %290, %v58
  %v292 = vpop.permute.xlu0 %291
  %294 = vset.pattern.permute.xlu0 1
  %295 = vperm.xlu0 %294, %v59
  %v296 = vpop.permute.xlu0 %295
  %298 = vset.pattern.permute.xlu0 1
  %299 = vperm.xlu0 %298, %v60
  %v300 = vpop.permute.xlu0 %299
  %302 = vset.pattern.permute.xlu0 1
  %303 = vperm.xlu0 %302, %v61
  %v304 = vpop.permute.xlu0 %303
  %306 = vset.pattern.permute.xlu0 1
  %307 = vperm.xlu0 %306, %v62
  %v308 = vpop.permute.xlu0 %307
  %310 = vset.pattern.permute.xlu0 1
  %311 = vperm.xlu0 %310, %v63
  %v312 = vpop.permute.xlu0 %311
  %314 = vset.pattern.permute.xlu0 1
  %315 = vperm.xlu0 %314, %v64
  %v316 = vpop.permute.xlu0 %315
  %318 = vset.pattern.permute.xlu0 1
  %319 = vperm.xlu0 %318, %v65
  %v320 = vpop.permute.xlu0 %319
  %v322 = vlaneseq
  %v323 = vshrl.u32 %v322, 7
  %v324 = vsub.s32 1, %v323
  %v325 = vrot.slane %v67, %v324
  %v326 = vmul.f32 %v224, %v325
  %v327 = vmul.f32 %v228, %v325
  %v328 = vmul.f32 %v232, %v325
  %v329 = vmul.f32 %v236, %v325
  %v330 = vmul.f32 %v240, %v325
  %v331 = vmul.f32 %v244, %v325
  %v332 = vmul.f32 %v248, %v325
  %v333 = vmul.f32 %v252, %v325
  %v334 = vmul.f32 %v256, %v325
  %v335 = vmul.f32 %v260, %v325
  %v336 = vmul.f32 %v264, %v325
  %v337 = vmul.f32 %v268, %v325
  %v338 = vmul.f32 %v272, %v325
  %v339 = vmul.f32 %v276, %v325
  %v340 = vmul.f32 %v280, %v325
  %v341 = vmul.f32 %v284, %v325
  %v342 = vmul.f32 %v288, %v325
  %v343 = vmul.f32 %v292, %v325
  %v344 = vmul.f32 %v296, %v325
  %v345 = vmul.f32 %v300, %v325
  %v346 = vmul.f32 %v304, %v325
  %v347 = vmul.f32 %v308, %v325
  %v348 = vmul.f32 %v312, %v325
  %v349 = vmul.f32 %v316, %v325
  %v350 = vmul.f32 %v320, %v325
  %v351 = vadd.f32 %v197, %v326
  %v352 = vadd.f32 %v198, %v327
  %v353 = vadd.f32 %v199, %v328
  %v354 = vadd.f32 %v200, %v329
  %v355 = vadd.f32 %v201, %v330
  %v356 = vadd.f32 %v202, %v331
  %v357 = vadd.f32 %v203, %v332
  %v358 = vadd.f32 %v204, %v333
  %v359 = vadd.f32 %v205, %v334
  %v360 = vadd.f32 %v206, %v335
  %v361 = vadd.f32 %v207, %v336
  %v362 = vadd.f32 %v208, %v337
  %v363 = vadd.f32 %v209, %v338
  %v364 = vadd.f32 %v210, %v339
  %v365 = vadd.f32 %v211, %v340
  %v366 = vadd.f32 %v212, %v341
  %v367 = vadd.f32 %v213, %v342
  %v368 = vadd.f32 %v214, %v343
  %v369 = vadd.f32 %v215, %v344
  %v370 = vadd.f32 %v216, %v345
  %v371 = vadd.f32 %v217, %v346
  %v372 = vadd.f32 %v218, %v347
  %v373 = vadd.f32 %v219, %v348
  %v374 = vadd.f32 %v220, %v349
  %v375 = vadd.f32 %v221, %v350
  %376 = vset.pattern.permute.xlu0 2
  %377 = vperm.xlu0 %376, %v41
  %v378 = vpop.permute.xlu0 %377
  %380 = vset.pattern.permute.xlu0 2
  %381 = vperm.xlu0 %380, %v42
  %v382 = vpop.permute.xlu0 %381
  %384 = vset.pattern.permute.xlu0 2
  %385 = vperm.xlu0 %384, %v43
  %v386 = vpop.permute.xlu0 %385
  %388 = vset.pattern.permute.xlu0 2
  %389 = vperm.xlu0 %388, %v44
  %v390 = vpop.permute.xlu0 %389
  %392 = vset.pattern.permute.xlu0 2
  %393 = vperm.xlu0 %392, %v45
  %v394 = vpop.permute.xlu0 %393
  %396 = vset.pattern.permute.xlu0 2
  %397 = vperm.xlu0 %396, %v46
  %v398 = vpop.permute.xlu0 %397
  %400 = vset.pattern.permute.xlu0 2
  %401 = vperm.xlu0 %400, %v47
  %v402 = vpop.permute.xlu0 %401
  %404 = vset.pattern.permute.xlu0 2
  %405 = vperm.xlu0 %404, %v48
  %v406 = vpop.permute.xlu0 %405
  %408 = vset.pattern.permute.xlu0 2
  %409 = vperm.xlu0 %408, %v49
  %v410 = vpop.permute.xlu0 %409
  %412 = vset.pattern.permute.xlu0 2
  %413 = vperm.xlu0 %412, %v50
  %v414 = vpop.permute.xlu0 %413
  %416 = vset.pattern.permute.xlu0 2
  %417 = vperm.xlu0 %416, %v51
  %v418 = vpop.permute.xlu0 %417
  %420 = vset.pattern.permute.xlu0 2
  %421 = vperm.xlu0 %420, %v52
  %v422 = vpop.permute.xlu0 %421
  %424 = vset.pattern.permute.xlu0 2
  %425 = vperm.xlu0 %424, %v53
  %v426 = vpop.permute.xlu0 %425
  %428 = vset.pattern.permute.xlu0 2
  %429 = vperm.xlu0 %428, %v54
  %v430 = vpop.permute.xlu0 %429
  %432 = vset.pattern.permute.xlu0 2
  %433 = vperm.xlu0 %432, %v55
  %v434 = vpop.permute.xlu0 %433
  %436 = vset.pattern.permute.xlu0 2
  %437 = vperm.xlu0 %436, %v56
  %v438 = vpop.permute.xlu0 %437
  %440 = vset.pattern.permute.xlu0 2
  %441 = vperm.xlu0 %440, %v57
  %v442 = vpop.permute.xlu0 %441
  %444 = vset.pattern.permute.xlu0 2
  %445 = vperm.xlu0 %444, %v58
  %v446 = vpop.permute.xlu0 %445
  %448 = vset.pattern.permute.xlu0 2
  %449 = vperm.xlu0 %448, %v59
  %v450 = vpop.permute.xlu0 %449
  %452 = vset.pattern.permute.xlu0 2
  %453 = vperm.xlu0 %452, %v60
  %v454 = vpop.permute.xlu0 %453
  %456 = vset.pattern.permute.xlu0 2
  %457 = vperm.xlu0 %456, %v61
  %v458 = vpop.permute.xlu0 %457
  %460 = vset.pattern.permute.xlu0 2
  %461 = vperm.xlu0 %460, %v62
  %v462 = vpop.permute.xlu0 %461
  %464 = vset.pattern.permute.xlu0 2
  %465 = vperm.xlu0 %464, %v63
  %v466 = vpop.permute.xlu0 %465
  %468 = vset.pattern.permute.xlu0 2
  %469 = vperm.xlu0 %468, %v64
  %v470 = vpop.permute.xlu0 %469
  %472 = vset.pattern.permute.xlu0 2
  %473 = vperm.xlu0 %472, %v65
  %v474 = vpop.permute.xlu0 %473
  %v476 = vlaneseq
  %v477 = vshrl.u32 %v476, 7
  %v478 = vsub.s32 2, %v477
  %v479 = vrot.slane %v67, %v478
  %v480 = vmul.f32 %v378, %v479
  %v481 = vmul.f32 %v382, %v479
  %v482 = vmul.f32 %v386, %v479
  %v483 = vmul.f32 %v390, %v479
  %v484 = vmul.f32 %v394, %v479
  %v485 = vmul.f32 %v398, %v479
  %v486 = vmul.f32 %v402, %v479
  %v487 = vmul.f32 %v406, %v479
  %v488 = vmul.f32 %v410, %v479
  %v489 = vmul.f32 %v414, %v479
  %v490 = vmul.f32 %v418, %v479
  %v491 = vmul.f32 %v422, %v479
  %v492 = vmul.f32 %v426, %v479
  %v493 = vmul.f32 %v430, %v479
  %v494 = vmul.f32 %v434, %v479
  %v495 = vmul.f32 %v438, %v479
  %v496 = vmul.f32 %v442, %v479
  %v497 = vmul.f32 %v446, %v479
  %v498 = vmul.f32 %v450, %v479
  %v499 = vmul.f32 %v454, %v479
  %v500 = vmul.f32 %v458, %v479
  %v501 = vmul.f32 %v462, %v479
  %v502 = vmul.f32 %v466, %v479
  %v503 = vmul.f32 %v470, %v479
  %v504 = vmul.f32 %v474, %v479
  %v505 = vadd.f32 %v351, %v480
  %v506 = vadd.f32 %v352, %v481
  %v507 = vadd.f32 %v353, %v482
  %v508 = vadd.f32 %v354, %v483
  %v509 = vadd.f32 %v355, %v484
  %v510 = vadd.f32 %v356, %v485
  %v511 = vadd.f32 %v357, %v486
  %v512 = vadd.f32 %v358, %v487
  %v513 = vadd.f32 %v359, %v488
  %v514 = vadd.f32 %v360, %v489
  %v515 = vadd.f32 %v361, %v490
  %v516 = vadd.f32 %v362, %v491
  %v517 = vadd.f32 %v363, %v492
  %v518 = vadd.f32 %v364, %v493
  %v519 = vadd.f32 %v365, %v494
  %v520 = vadd.f32 %v366, %v495
  %v521 = vadd.f32 %v367, %v496
  %v522 = vadd.f32 %v368, %v497
  %v523 = vadd.f32 %v369, %v498
  %v524 = vadd.f32 %v370, %v499
  %v525 = vadd.f32 %v371, %v500
  %v526 = vadd.f32 %v372, %v501
  %v527 = vadd.f32 %v373, %v502
  %v528 = vadd.f32 %v374, %v503
  %v529 = vadd.f32 %v375, %v504
  %v530 = vld [vmem:[%s2] sm:$0x1]
  %v532 = vlaneseq
  %v533 = vshrl.u32 %v532, 7
  %v534 = vsub.s32 0, %v533
  %v535 = vrot.slane %v530, %v534
  %v537 = vadd.f32 %v505, %v535
  %v538 = vadd.f32 %v506, %v535
  %v539 = vadd.f32 %v507, %v535
  %v540 = vadd.f32 %v508, %v535
  %v541 = vadd.f32 %v509, %v535
  %v542 = vadd.f32 %v510, %v535
  %v543 = vadd.f32 %v511, %v535
  %v544 = vadd.f32 %v512, %v535
  %v545 = vadd.f32 %v513, %v535
  %v546 = vadd.f32 %v514, %v535
  %v547 = vadd.f32 %v515, %v535
  %v548 = vadd.f32 %v516, %v535
  %v549 = vadd.f32 %v517, %v535
  %v550 = vadd.f32 %v518, %v535
  %v551 = vadd.f32 %v519, %v535
  %v552 = vadd.f32 %v520, %v535
  %v553 = vadd.f32 %v521, %v535
  %v554 = vadd.f32 %v522, %v535
  %v555 = vadd.f32 %v523, %v535
  %v556 = vadd.f32 %v524, %v535
  %v557 = vadd.f32 %v525, %v535
  %v558 = vadd.f32 %v526, %v535
  %v559 = vadd.f32 %v527, %v535
  %v560 = vadd.f32 %v528, %v535
  %v561 = vadd.f32 %v529, %v535
  %v562 = vmax.f32 %v537, 0.0
  %v563 = vmax.f32 %v538, 0.0
  %v564 = vmax.f32 %v539, 0.0
  %v565 = vmax.f32 %v540, 0.0
  %v566 = vmax.f32 %v541, 0.0
  %v567 = vmax.f32 %v542, 0.0
  %v568 = vmax.f32 %v543, 0.0
  %v569 = vmax.f32 %v544, 0.0
  %v570 = vmax.f32 %v545, 0.0
  %v571 = vmax.f32 %v546, 0.0
  %v572 = vmax.f32 %v547, 0.0
  %v573 = vmax.f32 %v548, 0.0
  %v574 = vmax.f32 %v549, 0.0
  %v575 = vmax.f32 %v550, 0.0
  %v576 = vmax.f32 %v551, 0.0
  %v577 = vmax.f32 %v552, 0.0
  %v578 = vmax.f32 %v553, 0.0
  %v579 = vmax.f32 %v554, 0.0
  %v580 = vmax.f32 %v555, 0.0
  %v581 = vmax.f32 %v556, 0.0
  %v582 = vmax.f32 %v557, 0.0
  %v583 = vmax.f32 %v558, 0.0
  %v584 = vmax.f32 %v559, 0.0
  %v585 = vmax.f32 %v560, 0.0
  %v586 = vmax.f32 %v561, 0.0
  %v587 = vpack.c.bf16 %v563, %v562
  %v588 = vpack.c.bf16 %v565, %v564
  %v589 = vpack.c.bf16 %v567, %v566
  %v590 = vpack.c.bf16 %v569, %v568
  %v591 = vpack.c.bf16 %v571, %v570
  %v592 = vpack.c.bf16 %v573, %v572
  %v593 = vpack.c.bf16 %v575, %v574
  %v594 = vpack.c.bf16 %v577, %v576
  %v595 = vpack.c.bf16 %v579, %v578
  %v596 = vpack.c.bf16 %v581, %v580
  %v597 = vpack.c.bf16 %v583, %v582
  %v598 = vpack.c.bf16 %v585, %v584
  %v599 = vpack.c.bf16 %v586, %v586
  %v600 = vld [vmem:[%s3] sm:$0xf]
  %v601 = vld [vmem:[%s3 + $0x4] sm:$0xf]
  %v602 = vld [vmem:[%s3 + $0x8] sm:$0xf]
  %v603 = vld [vmem:[%s3 + $0xc] sm:$0xf]
  %v604 = vld [vmem:[%s3 + $0x10] sm:$0xf]
  %v605 = vld [vmem:[%s3 + $0x14] sm:$0xf]
  %v606 = vld [vmem:[%s3 + $0x18] sm:$0xf]
  %v607 = vld [vmem:[%s3 + $0x1c] sm:$0xf]
  %v608 = vld [vmem:[%s3 + $0x20] sm:$0xf]
  %v609 = vld [vmem:[%s3 + $0x24] sm:$0xf]
  %v610 = vld [vmem:[%s3 + $0x28] sm:$0xf]
  %v611 = vld [vmem:[%s3 + $0x2c] sm:$0xf]
  %v612 = vld [vmem:[%s3 + $0x30] sm:$0xf]
  %v613 = vld [vmem:[%s3 + $0x34] sm:$0xf]
  %v614 = vld [vmem:[%s3 + $0x38] sm:$0xf]
  %v615 = vld [vmem:[%s3 + $0x3c] sm:$0xf]
  %v616 = vld [vmem:[%s4] sm:$0x1]
  %v618 = vlaneseq
  %v619 = vshrl.u32 %v618, 7
  %v620 = vsub.s32 0, %v619
  %v621 = vrot.slane %v616, %v620
  %v639 = vunpack.c.l.b16 %v600
  %v640 = vunpack.c.l.b16 %v601
  %v641 = vunpack.c.l.b16 %v602
  %v642 = vunpack.c.l.b16 %v603
  %v643 = vunpack.c.l.b16 %v604
  %v644 = vunpack.c.l.b16 %v605
  %v645 = vunpack.c.l.b16 %v606
  %v646 = vunpack.c.l.b16 %v607
  %v647 = vunpack.c.l.b16 %v608
  %v648 = vunpack.c.l.b16 %v609
  %v649 = vunpack.c.l.b16 %v610
  %v650 = vunpack.c.l.b16 %v611
  %v651 = vunpack.c.l.b16 %v612
  %v652 = vunpack.c.l.b16 %v613
  %v653 = vunpack.c.l.b16 %v614
  %v654 = vunpack.c.l.b16 %v615
  %v655 = vpack.c.b16 %v640, %v639
  %v656 = vpack.c.b16 %v642, %v641
  %v657 = vpack.c.b16 %v644, %v643
  %v658 = vpack.c.b16 %v646, %v645
  %v659 = vpack.c.b16 %v648, %v647
  %v660 = vpack.c.b16 %v650, %v649
  %v661 = vpack.c.b16 %v652, %v651
  %v662 = vpack.c.b16 %v654, %v653
  %671 = vmatprep.subr.bf16.mxu0 0
  %672 = vmatpush1.bf16.msra.mxu0 %v655
  %673 = vmatprep.subr.bf16.mxu0 0
  %674 = vmatpush1.bf16.msra.mxu0 %v656
  %675 = vmatprep.subr.bf16.mxu0 0
  %676 = vmatpush1.bf16.msra.mxu0 %v657
  %677 = vmatprep.subr.bf16.mxu0 0
  %678 = vmatpush1.bf16.msra.mxu0 %v658
  %679 = vmatprep.subr.bf16.mxu0 0
  %680 = vmatpush1.bf16.msra.mxu0 %v659
  %681 = vmatprep.subr.bf16.mxu0 0
  %682 = vmatpush1.bf16.msra.mxu0 %v660
  %683 = vmatprep.subr.bf16.mxu0 0
  %684 = vmatpush1.bf16.msra.mxu0 %v661
  %685 = vmatprep.subr.bf16.mxu0 0
  %686 = vmatpush1.bf16.msra.mxu0 %v662
  %687 = vmatprep.subr.bf16.mxu0 0
  %688 = vmatpush1.bf16.msra.mxu0 0
  %689 = vmatprep.subr.bf16.mxu0 0
  %690 = vmatpush1.bf16.msra.mxu0 0
  %691 = vmatprep.subr.bf16.mxu0 0
  %692 = vmatpush1.bf16.msra.mxu0 0
  %693 = vmatprep.subr.bf16.mxu0 0
  %694 = vmatpush1.bf16.msra.mxu0 0
  %695 = vmatprep.subr.bf16.mxu0 0
  %696 = vmatpush1.bf16.msra.mxu0 0
  %697 = vmatprep.subr.bf16.mxu0 0
  %698 = vmatpush1.bf16.msra.mxu0 0
  %699 = vmatprep.subr.bf16.mxu0 0
  %700 = vmatpush1.bf16.msra.mxu0 0
  %701 = vmatprep.subr.bf16.mxu0 0
  %702 = vmatpush1.bf16.msra.mxu0 0
  %703 = vmatprep.mubr.bf16.mxu0 0
  %704 = vmatmul.mubr.bf16.gmra.mrb[0].mxu0 %v587
  %v705 = vpop.f32.mrb[0].mxu0
  %v706 = vadd.f32 %v621, %v705
  %v707 = vpop.f32.mrb[0].mxu0
  %v708 = vpop.f32.mrb[0].mxu0
  %v709 = vadd.f32 %v621, %v708
  %v710 = vpop.f32.mrb[0].mxu0
  %711 = vmatprep.mubr.bf16.mxu0 0
  %712 = vmatmul.mubr.bf16.gmra.mrb[0].mxu0 %v588
  %v713 = vpop.f32.mrb[0].mxu0
  %v714 = vadd.f32 %v621, %v713
  %v715 = vpop.f32.mrb[0].mxu0
  %v716 = vpop.f32.mrb[0].mxu0
  %v717 = vadd.f32 %v621, %v716
  %v718 = vpop.f32.mrb[0].mxu0
  %719 = vmatprep.mubr.bf16.mxu0 0
  %720 = vmatmul.mubr.bf16.gmra.mrb[0].mxu0 %v589
  %v721 = vpop.f32.mrb[0].mxu0
  %v722 = vadd.f32 %v621, %v721
  %v723 = vpop.f32.mrb[0].mxu0
  %v724 = vpop.f32.mrb[0].mxu0
  %v725 = vadd.f32 %v621, %v724
  %v726 = vpop.f32.mrb[0].mxu0
  %727 = vmatprep.mubr.bf16.mxu0 0
  %728 = vmatmul.mubr.bf16.gmra.mrb[0].mxu0 %v590
  %v729 = vpop.f32.mrb[0].mxu0
  %v730 = vadd.f32 %v621, %v729
  %v731 = vpop.f32.mrb[0].mxu0
  %v732 = vpop.f32.mrb[0].mxu0
  %v733 = vadd.f32 %v621, %v732
  %v734 = vpop.f32.mrb[0].mxu0
  %735 = vmatprep.mubr.bf16.mxu0 0
  %736 = vmatmul.mubr.bf16.gmra.mrb[0].mxu0 %v591
  %v737 = vpop.f32.mrb[0].mxu0
  %v738 = vadd.f32 %v621, %v737
  %v739 = vpop.f32.mrb[0].mxu0
  %v740 = vpop.f32.mrb[0].mxu0
  %v741 = vadd.f32 %v621, %v740
  %v742 = vpop.f32.mrb[0].mxu0
  %743 = vmatprep.mubr.bf16.mxu0 0
  %744 = vmatmul.mubr.bf16.gmra.mrb[0].mxu0 %v592
  %v745 = vpop.f32.mrb[0].mxu0
  %v746 = vadd.f32 %v621, %v745
  %v747 = vpop.f32.mrb[0].mxu0
  %v748 = vpop.f32.mrb[0].mxu0
  %v749 = vadd.f32 %v621, %v748
  %v750 = vpop.f32.mrb[0].mxu0
  %751 = vmatprep.mubr.bf16.mxu0 0
  %752 = vmatmul.mubr.bf16.gmra.mrb[0].mxu0 %v593
  %v753 = vpop.f32.mrb[0].mxu0
  %v754 = vadd.f32 %v621, %v753
  %v755 = vpop.f32.mrb[0].mxu0
  %v756 = vpop.f32.mrb[0].mxu0
  %v757 = vadd.f32 %v621, %v756
  %v758 = vpop.f32.mrb[0].mxu0
  %759 = vmatprep.mubr.bf16.mxu0 0
  %760 = vmatmul.mubr.bf16.gmra.mrb[0].mxu0 %v594
  %v761 = vpop.f32.mrb[0].mxu0
  %v762 = vadd.f32 %v621, %v761
  %v763 = vpop.f32.mrb[0].mxu0
  %v764 = vpop.f32.mrb[0].mxu0
  %v765 = vadd.f32 %v621, %v764
  %v766 = vpop.f32.mrb[0].mxu0
  %767 = vmatprep.mubr.bf16.mxu0 0
  %768 = vmatmul.mubr.bf16.gmra.mrb[0].mxu0 %v595
  %v769 = vpop.f32.mrb[0].mxu0
  %v770 = vadd.f32 %v621, %v769
  %v771 = vpop.f32.mrb[0].mxu0
  %v772 = vpop.f32.mrb[0].mxu0
  %v773 = vadd.f32 %v621, %v772
  %v774 = vpop.f32.mrb[0].mxu0
  %775 = vmatprep.mubr.bf16.mxu0 0
  %776 = vmatmul.mubr.bf16.gmra.mrb[0].mxu0 %v596
  %v777 = vpop.f32.mrb[0].mxu0
  %v778 = vadd.f32 %v621, %v777
  %v779 = vpop.f32.mrb[0].mxu0
  %v780 = vpop.f32.mrb[0].mxu0
  %v781 = vadd.f32 %v621, %v780
  %v782 = vpop.f32.mrb[0].mxu0
  %783 = vmatprep.mubr.bf16.mxu0 0
  %784 = vmatmul.mubr.bf16.gmra.mrb[0].mxu0 %v597
  %v785 = vpop.f32.mrb[0].mxu0
  %v786 = vadd.f32 %v621, %v785
  %v787 = vpop.f32.mrb[0].mxu0
  %v788 = vpop.f32.mrb[0].mxu0
  %v789 = vadd.f32 %v621, %v788
  %v790 = vpop.f32.mrb[0].mxu0
  %791 = vmatprep.mubr.bf16.mxu0 0
  %792 = vmatmul.mubr.bf16.gmra.mrb[0].mxu0 %v598
  %v793 = vpop.f32.mrb[0].mxu0
  %v794 = vadd.f32 %v621, %v793
  %v795 = vpop.f32.mrb[0].mxu0
  %v796 = vpop.f32.mrb[0].mxu0
  %v797 = vadd.f32 %v621, %v796
  %v798 = vpop.f32.mrb[0].mxu0
  %799 = vmatprep.mubr.bf16.mxu0 0
  %800 = vmatmul.mubr.bf16.gmra.mrb[0].mxu0 %v599
  %v801 = vpop.f32.mrb[0].mxu0
  %v802 = vadd.f32 %v621, %v801
  %v803 = vpop.f32.mrb[0].mxu0
  %v804 = vpop.f32.mrb[0].mxu0
  %v805 = vpop.f32.mrb[0].mxu0
  %806 = vdwg.mxu0
  %v807 = vmax.f32 %v706, 0.0
  %v808 = vmax.f32 %v709, 0.0
  %v809 = vmax.f32 %v714, 0.0
  %v810 = vmax.f32 %v717, 0.0
  %v811 = vmax.f32 %v722, 0.0
  %v812 = vmax.f32 %v725, 0.0
  %v813 = vmax.f32 %v730, 0.0
  %v814 = vmax.f32 %v733, 0.0
  %v815 = vmax.f32 %v738, 0.0
  %v816 = vmax.f32 %v741, 0.0
  %v817 = vmax.f32 %v746, 0.0
  %v818 = vmax.f32 %v749, 0.0
  %v819 = vmax.f32 %v754, 0.0
  %v820 = vmax.f32 %v757, 0.0
  %v821 = vmax.f32 %v762, 0.0
  %v822 = vmax.f32 %v765, 0.0
  %v823 = vmax.f32 %v770, 0.0
  %v824 = vmax.f32 %v773, 0.0
  %v825 = vmax.f32 %v778, 0.0
  %v826 = vmax.f32 %v781, 0.0
  %v827 = vmax.f32 %v786, 0.0
  %v828 = vmax.f32 %v789, 0.0
  %v829 = vmax.f32 %v794, 0.0
  %v830 = vmax.f32 %v797, 0.0
  %v831 = vmax.f32 %v802, 0.0
  %v832 = vpack.c.bf16 %v808, %v807
  %v833 = vpack.c.bf16 %v810, %v809
  %v834 = vpack.c.bf16 %v812, %v811
  %v835 = vpack.c.bf16 %v814, %v813
  %v836 = vpack.c.bf16 %v816, %v815
  %v837 = vpack.c.bf16 %v818, %v817
  %v838 = vpack.c.bf16 %v820, %v819
  %v839 = vpack.c.bf16 %v822, %v821
  %v840 = vpack.c.bf16 %v824, %v823
  %v841 = vpack.c.bf16 %v826, %v825
  %v842 = vpack.c.bf16 %v828, %v827
  %v843 = vpack.c.bf16 %v830, %v829
  %v844 = vpack.c.bf16 %v831, %v831
  %v845 = vld [vmem:[%s5] sm:$0xf]
  %v846 = vld [vmem:[%s5 + $0x4] sm:$0xf]
  %v847 = vld [vmem:[%s5 + $0x8] sm:$0xf]
  %v848 = vld [vmem:[%s5 + $0xc] sm:$0xf]
  %v849 = vld [vmem:[%s5 + $0x10] sm:$0xf]
  %v850 = vld [vmem:[%s5 + $0x14] sm:$0xf]
  %v851 = vld [vmem:[%s5 + $0x18] sm:$0xf]
  %v852 = vld [vmem:[%s5 + $0x1c] sm:$0xf]
  %v853 = vld [vmem:[%s5 + $0x20] sm:$0xf]
  %v854 = vld [vmem:[%s5 + $0x24] sm:$0xf]
  %v855 = vld [vmem:[%s5 + $0x28] sm:$0xf]
  %v856 = vld [vmem:[%s5 + $0x2c] sm:$0xf]
  %v857 = vld [vmem:[%s5 + $0x30] sm:$0xf]
  %v858 = vld [vmem:[%s5 + $0x34] sm:$0xf]
  %v859 = vld [vmem:[%s5 + $0x38] sm:$0xf]
  %v860 = vld [vmem:[%s5 + $0x3c] sm:$0xf]
  %v861 = vld [vmem:[%s6] sm:$0x1]
  %v863 = vlaneseq
  %v864 = vshrl.u32 %v863, 7
  %v865 = vsub.s32 0, %v864
  %v866 = vrot.slane %v861, %v865
  %v884 = vunpack.c.l.b16 %v845
  %v885 = vunpack.c.l.b16 %v846
  %v886 = vunpack.c.l.b16 %v847
  %v887 = vunpack.c.l.b16 %v848
  %v888 = vunpack.c.l.b16 %v849
  %v889 = vunpack.c.l.b16 %v850
  %v890 = vunpack.c.l.b16 %v851
  %v891 = vunpack.c.l.b16 %v852
  %v892 = vunpack.c.l.b16 %v853
  %v893 = vunpack.c.l.b16 %v854
  %v894 = vunpack.c.l.b16 %v855
  %v895 = vunpack.c.l.b16 %v856
  %v896 = vunpack.c.l.b16 %v857
  %v897 = vunpack.c.l.b16 %v858
  %v898 = vunpack.c.l.b16 %v859
  %v899 = vunpack.c.l.b16 %v860
  %v900 = vpack.c.b16 %v885, %v884
  %v901 = vpack.c.b16 %v887, %v886
  %v902 = vpack.c.b16 %v889, %v888
  %v903 = vpack.c.b16 %v891, %v890
  %v904 = vpack.c.b16 %v893, %v892
  %v905 = vpack.c.b16 %v895, %v894
  %v906 = vpack.c.b16 %v897, %v896
  %v907 = vpack.c.b16 %v899, %v898
  %916 = vmatprep.subr.bf16.mxu0 0
  %917 = vmatpush1.bf16.msra.mxu0 %v900
  %918 = vmatprep.subr.bf16.mxu0 0
  %919 = vmatpush1.bf16.msra.mxu0 %v901
  %920 = vmatprep.subr.bf16.mxu0 0
  %921 = vmatpush1.bf16.msra.mxu0 %v902
  %922 = vmatprep.subr.bf16.mxu0 0
  %923 = vmatpush1.bf16.msra.mxu0 %v903
  %924 = vmatprep.subr.bf16.mxu0 0
  %925 = vmatpush1.bf16.msra.mxu0 %v904
  %926 = vmatprep.subr.bf16.mxu0 0
  %927 = vmatpush1.bf16.msra.mxu0 %v905
  %928 = vmatprep.subr.bf16.mxu0 0
  %929 = vmatpush1.bf16.msra.mxu0 %v906
  %930 = vmatprep.subr.bf16.mxu0 0
  %931 = vmatpush1.bf16.msra.mxu0 %v907
  %932 = vmatprep.subr.bf16.mxu0 0
  %933 = vmatpush1.bf16.msra.mxu0 0
  %934 = vmatprep.subr.bf16.mxu0 0
  %935 = vmatpush1.bf16.msra.mxu0 0
  %936 = vmatprep.subr.bf16.mxu0 0
  %937 = vmatpush1.bf16.msra.mxu0 0
  %938 = vmatprep.subr.bf16.mxu0 0
  %939 = vmatpush1.bf16.msra.mxu0 0
  %940 = vmatprep.subr.bf16.mxu0 0
  %941 = vmatpush1.bf16.msra.mxu0 0
  %942 = vmatprep.subr.bf16.mxu0 0
  %943 = vmatpush1.bf16.msra.mxu0 0
  %944 = vmatprep.subr.bf16.mxu0 0
  %945 = vmatpush1.bf16.msra.mxu0 0
  %946 = vmatprep.subr.bf16.mxu0 0
  %947 = vmatpush1.bf16.msra.mxu0 0
  %948 = vmatprep.mubr.bf16.mxu0 0
  %949 = vmatmul.mubr.bf16.gmra.mrb[0].mxu0 %v832
  %v950 = vpop.f32.mrb[0].mxu0
  %v951 = vadd.f32 %v866, %v950
  %v952 = vpop.f32.mrb[0].mxu0
  %v953 = vpop.f32.mrb[0].mxu0
  %v954 = vadd.f32 %v866, %v953
  %v955 = vpop.f32.mrb[0].mxu0
  %956 = vmatprep.mubr.bf16.mxu0 0
  %957 = vmatmul.mubr.bf16.gmra.mrb[0].mxu0 %v833
  %v958 = vpop.f32.mrb[0].mxu0
  %v959 = vadd.f32 %v866, %v958
  %v960 = vpop.f32.mrb[0].mxu0
  %v961 = vpop.f32.mrb[0].mxu0
  %v962 = vadd.f32 %v866, %v961
  %v963 = vpop.f32.mrb[0].mxu0
  %964 = vmatprep.mubr.bf16.mxu0 0
  %965 = vmatmul.mubr.bf16.gmra.mrb[0].mxu0 %v834
  %v966 = vpop.f32.mrb[0].mxu0
  %v967 = vadd.f32 %v866, %v966
  %v968 = vpop.f32.mrb[0].mxu0
  %v969 = vpop.f32.mrb[0].mxu0
  %v970 = vadd.f32 %v866, %v969
  %v971 = vpop.f32.mrb[0].mxu0
  %972 = vmatprep.mubr.bf16.mxu0 0
  %973 = vmatmul.mubr.bf16.gmra.mrb[0].mxu0 %v835
  %v974 = vpop.f32.mrb[0].mxu0
  %v975 = vadd.f32 %v866, %v974
  %v976 = vpop.f32.mrb[0].mxu0
  %v977 = vpop.f32.mrb[0].mxu0
  %v978 = vadd.f32 %v866, %v977
  %v979 = vpop.f32.mrb[0].mxu0
  %980 = vmatprep.mubr.bf16.mxu0 0
  %981 = vmatmul.mubr.bf16.gmra.mrb[0].mxu0 %v836
  %v982 = vpop.f32.mrb[0].mxu0
  %v983 = vadd.f32 %v866, %v982
  %v984 = vpop.f32.mrb[0].mxu0
  %v985 = vpop.f32.mrb[0].mxu0
  %v986 = vadd.f32 %v866, %v985
  %v987 = vpop.f32.mrb[0].mxu0
  %988 = vmatprep.mubr.bf16.mxu0 0
  %989 = vmatmul.mubr.bf16.gmra.mrb[0].mxu0 %v837
  %v990 = vpop.f32.mrb[0].mxu0
  %v991 = vadd.f32 %v866, %v990
  %v992 = vpop.f32.mrb[0].mxu0
  %v993 = vpop.f32.mrb[0].mxu0
  %v994 = vadd.f32 %v866, %v993
  %v995 = vpop.f32.mrb[0].mxu0
  %996 = vmatprep.mubr.bf16.mxu0 0
  %997 = vmatmul.mubr.bf16.gmra.mrb[0].mxu0 %v838
  %v998 = vpop.f32.mrb[0].mxu0
  %v999 = vadd.f32 %v866, %v998
  %v1000 = vpop.f32.mrb[0].mxu0
  %v1001 = vpop.f32.mrb[0].mxu0
  %v1002 = vadd.f32 %v866, %v1001
  %v1003 = vpop.f32.mrb[0].mxu0
  %1004 = vmatprep.mubr.bf16.mxu0 0
  %1005 = vmatmul.mubr.bf16.gmra.mrb[0].mxu0 %v839
  %v1006 = vpop.f32.mrb[0].mxu0
  %v1007 = vadd.f32 %v866, %v1006
  %v1008 = vpop.f32.mrb[0].mxu0
  %v1009 = vpop.f32.mrb[0].mxu0
  %v1010 = vadd.f32 %v866, %v1009
  %v1011 = vpop.f32.mrb[0].mxu0
  %1012 = vmatprep.mubr.bf16.mxu0 0
  %1013 = vmatmul.mubr.bf16.gmra.mrb[0].mxu0 %v840
  %v1014 = vpop.f32.mrb[0].mxu0
  %v1015 = vadd.f32 %v866, %v1014
  %v1016 = vpop.f32.mrb[0].mxu0
  %v1017 = vpop.f32.mrb[0].mxu0
  %v1018 = vadd.f32 %v866, %v1017
  %v1019 = vpop.f32.mrb[0].mxu0
  %1020 = vmatprep.mubr.bf16.mxu0 0
  %1021 = vmatmul.mubr.bf16.gmra.mrb[0].mxu0 %v841
  %v1022 = vpop.f32.mrb[0].mxu0
  %v1023 = vadd.f32 %v866, %v1022
  %v1024 = vpop.f32.mrb[0].mxu0
  %v1025 = vpop.f32.mrb[0].mxu0
  %v1026 = vadd.f32 %v866, %v1025
  %v1027 = vpop.f32.mrb[0].mxu0
  %1028 = vmatprep.mubr.bf16.mxu0 0
  %1029 = vmatmul.mubr.bf16.gmra.mrb[0].mxu0 %v842
  %v1030 = vpop.f32.mrb[0].mxu0
  %v1031 = vadd.f32 %v866, %v1030
  %v1032 = vpop.f32.mrb[0].mxu0
  %v1033 = vpop.f32.mrb[0].mxu0
  %v1034 = vadd.f32 %v866, %v1033
  %v1035 = vpop.f32.mrb[0].mxu0
  %1036 = vmatprep.mubr.bf16.mxu0 0
  %1037 = vmatmul.mubr.bf16.gmra.mrb[0].mxu0 %v843
  %v1038 = vpop.f32.mrb[0].mxu0
  %v1039 = vadd.f32 %v866, %v1038
  %v1040 = vpop.f32.mrb[0].mxu0
  %v1041 = vpop.f32.mrb[0].mxu0
  %v1042 = vadd.f32 %v866, %v1041
  %v1043 = vpop.f32.mrb[0].mxu0
  %1044 = vmatprep.mubr.bf16.mxu0 0
  %1045 = vmatmul.mubr.bf16.gmra.mrb[0].mxu0 %v844
  %v1046 = vpop.f32.mrb[0].mxu0
  %v1047 = vadd.f32 %v866, %v1046
  %v1048 = vpop.f32.mrb[0].mxu0
  %v1049 = vpop.f32.mrb[0].mxu0
  %v1050 = vpop.f32.mrb[0].mxu0
  %1051 = vdwg.mxu0
  %v1052 = vmax.f32 %v951, 0.0
  %v1053 = vmax.f32 %v954, 0.0
  %v1054 = vmax.f32 %v959, 0.0
  %v1055 = vmax.f32 %v962, 0.0
  %v1056 = vmax.f32 %v967, 0.0
  %v1057 = vmax.f32 %v970, 0.0
  %v1058 = vmax.f32 %v975, 0.0
  %v1059 = vmax.f32 %v978, 0.0
  %v1060 = vmax.f32 %v983, 0.0
  %v1061 = vmax.f32 %v986, 0.0
  %v1062 = vmax.f32 %v991, 0.0
  %v1063 = vmax.f32 %v994, 0.0
  %v1064 = vmax.f32 %v999, 0.0
  %v1065 = vmax.f32 %v1002, 0.0
  %v1066 = vmax.f32 %v1007, 0.0
  %v1067 = vmax.f32 %v1010, 0.0
  %v1068 = vmax.f32 %v1015, 0.0
  %v1069 = vmax.f32 %v1018, 0.0
  %v1070 = vmax.f32 %v1023, 0.0
  %v1071 = vmax.f32 %v1026, 0.0
  %v1072 = vmax.f32 %v1031, 0.0
  %v1073 = vmax.f32 %v1034, 0.0
  %v1074 = vmax.f32 %v1039, 0.0
  %v1075 = vmax.f32 %v1042, 0.0
  %v1076 = vmax.f32 %v1047, 0.0
  %v1077 = vpack.c.bf16 %v1053, %v1052
  %v1078 = vpack.c.bf16 %v1055, %v1054
  %v1079 = vpack.c.bf16 %v1057, %v1056
  %v1080 = vpack.c.bf16 %v1059, %v1058
  %v1081 = vpack.c.bf16 %v1061, %v1060
  %v1082 = vpack.c.bf16 %v1063, %v1062
  %v1083 = vpack.c.bf16 %v1065, %v1064
  %v1084 = vpack.c.bf16 %v1067, %v1066
  %v1085 = vpack.c.bf16 %v1069, %v1068
  %v1086 = vpack.c.bf16 %v1071, %v1070
  %v1087 = vpack.c.bf16 %v1073, %v1072
  %v1088 = vpack.c.bf16 %v1075, %v1074
  %v1089 = vpack.c.bf16 %v1076, %v1076
  %v1090 = vld [vmem:[%s7] sm:$0xf]
  %v1091 = vld [vmem:[%s7 + $0x4] sm:$0xf]
  %v1092 = vld [vmem:[%s7 + $0x8] sm:$0xf]
  %v1093 = vld [vmem:[%s7 + $0xc] sm:$0xf]
  %v1094 = vld [vmem:[%s7 + $0x10] sm:$0xf]
  %v1095 = vld [vmem:[%s7 + $0x14] sm:$0xf]
  %v1096 = vld [vmem:[%s7 + $0x18] sm:$0xf]
  %v1097 = vld [vmem:[%s7 + $0x1c] sm:$0xf]
  %v1098 = vld [vmem:[%s7 + $0x20] sm:$0xf]
  %v1099 = vld [vmem:[%s7 + $0x24] sm:$0xf]
  %v1100 = vld [vmem:[%s7 + $0x28] sm:$0xf]
  %v1101 = vld [vmem:[%s7 + $0x2c] sm:$0xf]
  %v1102 = vld [vmem:[%s7 + $0x30] sm:$0xf]
  %v1103 = vld [vmem:[%s7 + $0x34] sm:$0xf]
  %v1104 = vld [vmem:[%s7 + $0x38] sm:$0xf]
  %v1105 = vld [vmem:[%s7 + $0x3c] sm:$0xf]
  %v1106 = vld [vmem:[%s8] sm:$0x1]
  %v1108 = vlaneseq
  %v1109 = vshrl.u32 %v1108, 7
  %v1110 = vsub.s32 0, %v1109
  %v1111 = vrot.slane %v1106, %v1110
  %v1129 = vunpack.c.l.b16 %v1090
  %v1130 = vunpack.c.l.b16 %v1091
  %v1131 = vunpack.c.l.b16 %v1092
  %v1132 = vunpack.c.l.b16 %v1093
  %v1133 = vunpack.c.l.b16 %v1094
  %v1134 = vunpack.c.l.b16 %v1095
  %v1135 = vunpack.c.l.b16 %v1096
  %v1136 = vunpack.c.l.b16 %v1097
  %v1137 = vunpack.c.l.b16 %v1098
  %v1138 = vunpack.c.l.b16 %v1099
  %v1139 = vunpack.c.l.b16 %v1100
  %v1140 = vunpack.c.l.b16 %v1101
  %v1141 = vunpack.c.l.b16 %v1102
  %v1142 = vunpack.c.l.b16 %v1103
  %v1143 = vunpack.c.l.b16 %v1104
  %v1144 = vunpack.c.l.b16 %v1105
  %v1145 = vpack.c.b16 %v1130, %v1129
  %v1146 = vpack.c.b16 %v1132, %v1131
  %v1147 = vpack.c.b16 %v1134, %v1133
  %v1148 = vpack.c.b16 %v1136, %v1135
  %v1149 = vpack.c.b16 %v1138, %v1137
  %v1150 = vpack.c.b16 %v1140, %v1139
  %v1151 = vpack.c.b16 %v1142, %v1141
  %v1152 = vpack.c.b16 %v1144, %v1143
  %1161 = vmatprep.subr.bf16.mxu0 0
  %1162 = vmatpush1.bf16.msra.mxu0 %v1145
  %1163 = vmatprep.subr.bf16.mxu0 0
  %1164 = vmatpush1.bf16.msra.mxu0 %v1146
  %1165 = vmatprep.subr.bf16.mxu0 0
  %1166 = vmatpush1.bf16.msra.mxu0 %v1147
  %1167 = vmatprep.subr.bf16.mxu0 0
  %1168 = vmatpush1.bf16.msra.mxu0 %v1148
  %1169 = vmatprep.subr.bf16.mxu0 0
  %1170 = vmatpush1.bf16.msra.mxu0 %v1149
  %1171 = vmatprep.subr.bf16.mxu0 0
  %1172 = vmatpush1.bf16.msra.mxu0 %v1150
  %1173 = vmatprep.subr.bf16.mxu0 0
  %1174 = vmatpush1.bf16.msra.mxu0 %v1151
  %1175 = vmatprep.subr.bf16.mxu0 0
  %1176 = vmatpush1.bf16.msra.mxu0 %v1152
  %1177 = vmatprep.subr.bf16.mxu0 0
  %1178 = vmatpush1.bf16.msra.mxu0 0
  %1179 = vmatprep.subr.bf16.mxu0 0
  %1180 = vmatpush1.bf16.msra.mxu0 0
  %1181 = vmatprep.subr.bf16.mxu0 0
  %1182 = vmatpush1.bf16.msra.mxu0 0
  %1183 = vmatprep.subr.bf16.mxu0 0
  %1184 = vmatpush1.bf16.msra.mxu0 0
  %1185 = vmatprep.subr.bf16.mxu0 0
  %1186 = vmatpush1.bf16.msra.mxu0 0
  %1187 = vmatprep.subr.bf16.mxu0 0
  %1188 = vmatpush1.bf16.msra.mxu0 0
  %1189 = vmatprep.subr.bf16.mxu0 0
  %1190 = vmatpush1.bf16.msra.mxu0 0
  %1191 = vmatprep.subr.bf16.mxu0 0
  %1192 = vmatpush1.bf16.msra.mxu0 0
  %1193 = vmatprep.mubr.bf16.mxu0 0
  %1194 = vmatmul.mubr.bf16.gmra.mrb[0].mxu0 %v1077
  %v1195 = vpop.f32.mrb[0].mxu0
  %v1196 = vadd.f32 %v1111, %v1195
  %v1197 = vpop.f32.mrb[0].mxu0
  %v1198 = vpop.f32.mrb[0].mxu0
  %v1199 = vadd.f32 %v1111, %v1198
  %v1200 = vpop.f32.mrb[0].mxu0
  %1201 = vmatprep.mubr.bf16.mxu0 0
  %1202 = vmatmul.mubr.bf16.gmra.mrb[0].mxu0 %v1078
  %v1203 = vpop.f32.mrb[0].mxu0
  %v1204 = vadd.f32 %v1111, %v1203
  %v1205 = vpop.f32.mrb[0].mxu0
  %v1206 = vpop.f32.mrb[0].mxu0
  %v1207 = vadd.f32 %v1111, %v1206
  %v1208 = vpop.f32.mrb[0].mxu0
  %1209 = vmatprep.mubr.bf16.mxu0 0
  %1210 = vmatmul.mubr.bf16.gmra.mrb[0].mxu0 %v1079
  %v1211 = vpop.f32.mrb[0].mxu0
  %v1212 = vadd.f32 %v1111, %v1211
  %v1213 = vpop.f32.mrb[0].mxu0
  %v1214 = vpop.f32.mrb[0].mxu0
  %v1215 = vadd.f32 %v1111, %v1214
  %v1216 = vpop.f32.mrb[0].mxu0
  %1217 = vmatprep.mubr.bf16.mxu0 0
  %1218 = vmatmul.mubr.bf16.gmra.mrb[0].mxu0 %v1080
  %v1219 = vpop.f32.mrb[0].mxu0
  %v1220 = vadd.f32 %v1111, %v1219
  %v1221 = vpop.f32.mrb[0].mxu0
  %v1222 = vpop.f32.mrb[0].mxu0
  %v1223 = vadd.f32 %v1111, %v1222
  %v1224 = vpop.f32.mrb[0].mxu0
  %1225 = vmatprep.mubr.bf16.mxu0 0
  %1226 = vmatmul.mubr.bf16.gmra.mrb[0].mxu0 %v1081
  %v1227 = vpop.f32.mrb[0].mxu0
  %v1228 = vadd.f32 %v1111, %v1227
  %v1229 = vpop.f32.mrb[0].mxu0
  %v1230 = vpop.f32.mrb[0].mxu0
  %v1231 = vadd.f32 %v1111, %v1230
  %v1232 = vpop.f32.mrb[0].mxu0
  %1233 = vmatprep.mubr.bf16.mxu0 0
  %1234 = vmatmul.mubr.bf16.gmra.mrb[0].mxu0 %v1082
  %v1235 = vpop.f32.mrb[0].mxu0
  %v1236 = vadd.f32 %v1111, %v1235
  %v1237 = vpop.f32.mrb[0].mxu0
  %v1238 = vpop.f32.mrb[0].mxu0
  %v1239 = vadd.f32 %v1111, %v1238
  %v1240 = vpop.f32.mrb[0].mxu0
  %1241 = vmatprep.mubr.bf16.mxu0 0
  %1242 = vmatmul.mubr.bf16.gmra.mrb[0].mxu0 %v1083
  %v1243 = vpop.f32.mrb[0].mxu0
  %v1244 = vadd.f32 %v1111, %v1243
  %v1245 = vpop.f32.mrb[0].mxu0
  %v1246 = vpop.f32.mrb[0].mxu0
  %v1247 = vadd.f32 %v1111, %v1246
  %v1248 = vpop.f32.mrb[0].mxu0
  %1249 = vmatprep.mubr.bf16.mxu0 0
  %1250 = vmatmul.mubr.bf16.gmra.mrb[0].mxu0 %v1084
  %v1251 = vpop.f32.mrb[0].mxu0
  %v1252 = vadd.f32 %v1111, %v1251
  %v1253 = vpop.f32.mrb[0].mxu0
  %v1254 = vpop.f32.mrb[0].mxu0
  %v1255 = vadd.f32 %v1111, %v1254
  %v1256 = vpop.f32.mrb[0].mxu0
  %1257 = vmatprep.mubr.bf16.mxu0 0
  %1258 = vmatmul.mubr.bf16.gmra.mrb[0].mxu0 %v1085
  %v1259 = vpop.f32.mrb[0].mxu0
  %v1260 = vadd.f32 %v1111, %v1259
  %v1261 = vpop.f32.mrb[0].mxu0
  %v1262 = vpop.f32.mrb[0].mxu0
  %v1263 = vadd.f32 %v1111, %v1262
  %v1264 = vpop.f32.mrb[0].mxu0
  %1265 = vmatprep.mubr.bf16.mxu0 0
  %1266 = vmatmul.mubr.bf16.gmra.mrb[0].mxu0 %v1086
  %v1267 = vpop.f32.mrb[0].mxu0
  %v1268 = vadd.f32 %v1111, %v1267
  %v1269 = vpop.f32.mrb[0].mxu0
  %v1270 = vpop.f32.mrb[0].mxu0
  %v1271 = vadd.f32 %v1111, %v1270
  %v1272 = vpop.f32.mrb[0].mxu0
  %1273 = vmatprep.mubr.bf16.mxu0 0
  %1274 = vmatmul.mubr.bf16.gmra.mrb[0].mxu0 %v1087
  %v1275 = vpop.f32.mrb[0].mxu0
  %v1276 = vadd.f32 %v1111, %v1275
  %v1277 = vpop.f32.mrb[0].mxu0
  %v1278 = vpop.f32.mrb[0].mxu0
  %v1279 = vadd.f32 %v1111, %v1278
  %v1280 = vpop.f32.mrb[0].mxu0
  %1281 = vmatprep.mubr.bf16.mxu0 0
  %1282 = vmatmul.mubr.bf16.gmra.mrb[0].mxu0 %v1088
  %v1283 = vpop.f32.mrb[0].mxu0
  %v1284 = vadd.f32 %v1111, %v1283
  %v1285 = vpop.f32.mrb[0].mxu0
  %v1286 = vpop.f32.mrb[0].mxu0
  %v1287 = vadd.f32 %v1111, %v1286
  %v1288 = vpop.f32.mrb[0].mxu0
  %1289 = vmatprep.mubr.bf16.mxu0 0
  %1290 = vmatmul.mubr.bf16.gmra.mrb[0].mxu0 %v1089
  %v1291 = vpop.f32.mrb[0].mxu0
  %v1292 = vadd.f32 %v1111, %v1291
  %v1293 = vpop.f32.mrb[0].mxu0
  %v1294 = vpop.f32.mrb[0].mxu0
  %v1295 = vpop.f32.mrb[0].mxu0
  %1296 = vdwg.mxu0
  %v1297 = vmax.f32 %v1196, 0.0
  %v1298 = vmax.f32 %v1199, 0.0
  %v1299 = vmax.f32 %v1204, 0.0
  %v1300 = vmax.f32 %v1207, 0.0
  %v1301 = vmax.f32 %v1212, 0.0
  %v1302 = vmax.f32 %v1215, 0.0
  %v1303 = vmax.f32 %v1220, 0.0
  %v1304 = vmax.f32 %v1223, 0.0
  %v1305 = vmax.f32 %v1228, 0.0
  %v1306 = vmax.f32 %v1231, 0.0
  %v1307 = vmax.f32 %v1236, 0.0
  %v1308 = vmax.f32 %v1239, 0.0
  %v1309 = vmax.f32 %v1244, 0.0
  %v1310 = vmax.f32 %v1247, 0.0
  %v1311 = vmax.f32 %v1252, 0.0
  %v1312 = vmax.f32 %v1255, 0.0
  %v1313 = vmax.f32 %v1260, 0.0
  %v1314 = vmax.f32 %v1263, 0.0
  %v1315 = vmax.f32 %v1268, 0.0
  %v1316 = vmax.f32 %v1271, 0.0
  %v1317 = vmax.f32 %v1276, 0.0
  %v1318 = vmax.f32 %v1279, 0.0
  %v1319 = vmax.f32 %v1284, 0.0
  %v1320 = vmax.f32 %v1287, 0.0
  %v1321 = vmax.f32 %v1292, 0.0
  %v1322 = vld [vmem:[%s9] sm:$0x1]
  %v1323 = vunpack.c.l.bf16 %v1322
  %v1324 = vlaneseq
  %v1325 = vshrl.u32 %v1324, 7
  %v1326 = vsub.s32 0, %v1325
  %v1327 = vrot.slane %v1323, %v1326
  %v1328 = vmul.f32 %v1297, %v1327
  %v1329 = vmul.f32 %v1298, %v1327
  %v1330 = vmul.f32 %v1299, %v1327
  %v1331 = vmul.f32 %v1300, %v1327
  %v1332 = vmul.f32 %v1301, %v1327
  %v1333 = vmul.f32 %v1302, %v1327
  %v1334 = vmul.f32 %v1303, %v1327
  %v1335 = vmul.f32 %v1304, %v1327
  %v1336 = vmul.f32 %v1305, %v1327
  %v1337 = vmul.f32 %v1306, %v1327
  %v1338 = vmul.f32 %v1307, %v1327
  %v1339 = vmul.f32 %v1308, %v1327
  %v1340 = vmul.f32 %v1309, %v1327
  %v1341 = vmul.f32 %v1310, %v1327
  %v1342 = vmul.f32 %v1311, %v1327
  %v1343 = vmul.f32 %v1312, %v1327
  %v1344 = vmul.f32 %v1313, %v1327
  %v1345 = vmul.f32 %v1314, %v1327
  %v1346 = vmul.f32 %v1315, %v1327
  %v1347 = vmul.f32 %v1316, %v1327
  %v1348 = vmul.f32 %v1317, %v1327
  %v1349 = vmul.f32 %v1318, %v1327
  %v1350 = vmul.f32 %v1319, %v1327
  %v1351 = vmul.f32 %v1320, %v1327
  %v1352 = vmul.f32 %v1321, %v1327
  %1353 = vadd.xlane.f32.xlu0 %v1328
  %v1354 = vpop.xlane.xlu0 %1353
  %1355 = vadd.xlane.f32.xlu0 %v1329
  %v1356 = vpop.xlane.xlu0 %1355
  %1357 = vadd.xlane.f32.xlu0 %v1330
  %v1358 = vpop.xlane.xlu0 %1357
  %1359 = vadd.xlane.f32.xlu0 %v1331
  %v1360 = vpop.xlane.xlu0 %1359
  %1361 = vadd.xlane.f32.xlu0 %v1332
  %v1362 = vpop.xlane.xlu0 %1361
  %1363 = vadd.xlane.f32.xlu0 %v1333
  %v1364 = vpop.xlane.xlu0 %1363
  %1365 = vadd.xlane.f32.xlu0 %v1334
  %v1366 = vpop.xlane.xlu0 %1365
  %1367 = vadd.xlane.f32.xlu0 %v1335
  %v1368 = vpop.xlane.xlu0 %1367
  %1369 = vadd.xlane.f32.xlu0 %v1336
  %v1370 = vpop.xlane.xlu0 %1369
  %1371 = vadd.xlane.f32.xlu0 %v1337
  %v1372 = vpop.xlane.xlu0 %1371
  %1373 = vadd.xlane.f32.xlu0 %v1338
  %v1374 = vpop.xlane.xlu0 %1373
  %1375 = vadd.xlane.f32.xlu0 %v1339
  %v1376 = vpop.xlane.xlu0 %1375
  %1377 = vadd.xlane.f32.xlu0 %v1340
  %v1378 = vpop.xlane.xlu0 %1377
  %1379 = vadd.xlane.f32.xlu0 %v1341
  %v1380 = vpop.xlane.xlu0 %1379
  %1381 = vadd.xlane.f32.xlu0 %v1342
  %v1382 = vpop.xlane.xlu0 %1381
  %1383 = vadd.xlane.f32.xlu0 %v1343
  %v1384 = vpop.xlane.xlu0 %1383
  %1385 = vadd.xlane.f32.xlu0 %v1344
  %v1386 = vpop.xlane.xlu0 %1385
  %1387 = vadd.xlane.f32.xlu0 %v1345
  %v1388 = vpop.xlane.xlu0 %1387
  %1389 = vadd.xlane.f32.xlu0 %v1346
  %v1390 = vpop.xlane.xlu0 %1389
  %1391 = vadd.xlane.f32.xlu0 %v1347
  %v1392 = vpop.xlane.xlu0 %1391
  %1393 = vadd.xlane.f32.xlu0 %v1348
  %v1394 = vpop.xlane.xlu0 %1393
  %1395 = vadd.xlane.f32.xlu0 %v1349
  %v1396 = vpop.xlane.xlu0 %1395
  %1397 = vadd.xlane.f32.xlu0 %v1350
  %v1398 = vpop.xlane.xlu0 %1397
  %1399 = vadd.xlane.f32.xlu0 %v1351
  %v1400 = vpop.xlane.xlu0 %1399
  %1401 = vadd.xlane.f32.xlu0 %v1352
  %v1402 = vpop.xlane.xlu0 %1401
  %v1403 = vld [vmem:[#allocation2] sm:$0x1]
  %v1405 = vlaneseq
  %v1406 = vshrl.u32 %v1405, 7
  %v1407 = vsub.s32 0, %v1406
  %v1408 = vrot.slane %v1403, %v1407
  %v1410 = vadd.f32 %v1354, %v1408
  %v1411 = vadd.f32 %v1356, %v1408
  %v1412 = vadd.f32 %v1358, %v1408
  %v1413 = vadd.f32 %v1360, %v1408
  %v1414 = vadd.f32 %v1362, %v1408
  %v1415 = vadd.f32 %v1364, %v1408
  %v1416 = vadd.f32 %v1366, %v1408
  %v1417 = vadd.f32 %v1368, %v1408
  %v1418 = vadd.f32 %v1370, %v1408
  %v1419 = vadd.f32 %v1372, %v1408
  %v1420 = vadd.f32 %v1374, %v1408
  %v1421 = vadd.f32 %v1376, %v1408
  %v1422 = vadd.f32 %v1378, %v1408
  %v1423 = vadd.f32 %v1380, %v1408
  %v1424 = vadd.f32 %v1382, %v1408
  %v1425 = vadd.f32 %v1384, %v1408
  %v1426 = vadd.f32 %v1386, %v1408
  %v1427 = vadd.f32 %v1388, %v1408
  %v1428 = vadd.f32 %v1390, %v1408
  %v1429 = vadd.f32 %v1392, %v1408
  %v1430 = vadd.f32 %v1394, %v1408
  %v1431 = vadd.f32 %v1396, %v1408
  %v1432 = vadd.f32 %v1398, %v1408
  %v1433 = vadd.f32 %v1400, %v1408
  %v1434 = vadd.f32 %v1402, %v1408
  %v1435 = vxor.u32 %v1410, 2147483648
  %v1436 = vxor.u32 %v1411, 2147483648
  %v1437 = vxor.u32 %v1412, 2147483648
  %v1438 = vxor.u32 %v1413, 2147483648
  %v1439 = vxor.u32 %v1414, 2147483648
  %v1440 = vxor.u32 %v1415, 2147483648
  %v1441 = vxor.u32 %v1416, 2147483648
  %v1442 = vxor.u32 %v1417, 2147483648
  %v1443 = vxor.u32 %v1418, 2147483648
  %v1444 = vxor.u32 %v1419, 2147483648
  %v1445 = vxor.u32 %v1420, 2147483648
  %v1446 = vxor.u32 %v1421, 2147483648
  %v1447 = vxor.u32 %v1422, 2147483648
  %v1448 = vxor.u32 %v1423, 2147483648
  %v1449 = vxor.u32 %v1424, 2147483648
  %v1450 = vxor.u32 %v1425, 2147483648
  %v1451 = vxor.u32 %v1426, 2147483648
  %v1452 = vxor.u32 %v1427, 2147483648
  %v1453 = vxor.u32 %v1428, 2147483648
  %v1454 = vxor.u32 %v1429, 2147483648
  %v1455 = vxor.u32 %v1430, 2147483648
  %v1456 = vxor.u32 %v1431, 2147483648
  %v1457 = vxor.u32 %v1432, 2147483648
  %v1458 = vxor.u32 %v1433, 2147483648
  %v1459 = vxor.u32 %v1434, 2147483648
  %v1460 = vmul.f32 %v1435, 1.442695
  %v1461 = vpow.pop %v1460
  %v1462 = vmul.f32 %v1436, 1.442695
  %v1463 = vpow.pop %v1462
  %v1464 = vmul.f32 %v1437, 1.442695
  %v1465 = vpow.pop %v1464
  %v1466 = vmul.f32 %v1438, 1.442695
  %v1467 = vpow.pop %v1466
  %v1468 = vmul.f32 %v1439, 1.442695
  %v1469 = vpow.pop %v1468
  %v1470 = vmul.f32 %v1440, 1.442695
  %v1471 = vpow.pop %v1470
  %v1472 = vmul.f32 %v1441, 1.442695
  %v1473 = vpow.pop %v1472
  %v1474 = vmul.f32 %v1442, 1.442695
  %v1475 = vpow.pop %v1474
  %v1476 = vmul.f32 %v1443, 1.442695
  %v1477 = vpow.pop %v1476
  %v1478 = vmul.f32 %v1444, 1.442695
  %v1479 = vpow.pop %v1478
  %v1480 = vmul.f32 %v1445, 1.442695
  %v1481 = vpow.pop %v1480
  %v1482 = vmul.f32 %v1446, 1.442695
  %v1483 = vpow.pop %v1482
  %v1484 = vmul.f32 %v1447, 1.442695
  %v1485 = vpow.pop %v1484
  %v1486 = vmul.f32 %v1448, 1.442695
  %v1487 = vpow.pop %v1486
  %v1488 = vmul.f32 %v1449, 1.442695
  %v1489 = vpow.pop %v1488
  %v1490 = vmul.f32 %v1450, 1.442695
  %v1491 = vpow.pop %v1490
  %v1492 = vmul.f32 %v1451, 1.442695
  %v1493 = vpow.pop %v1492
  %v1494 = vmul.f32 %v1452, 1.442695
  %v1495 = vpow.pop %v1494
  %v1496 = vmul.f32 %v1453, 1.442695
  %v1497 = vpow.pop %v1496
  %v1498 = vmul.f32 %v1454, 1.442695
  %v1499 = vpow.pop %v1498
  %v1500 = vmul.f32 %v1455, 1.442695
  %v1501 = vpow.pop %v1500
  %v1502 = vmul.f32 %v1456, 1.442695
  %v1503 = vpow.pop %v1502
  %v1504 = vmul.f32 %v1457, 1.442695
  %v1505 = vpow.pop %v1504
  %v1506 = vmul.f32 %v1458, 1.442695
  %v1507 = vpow.pop %v1506
  %v1508 = vmul.f32 %v1459, 1.442695
  %v1509 = vpow.pop %v1508
  %v1510 = vadd.f32 %v1461, 1.0
  %v1511 = vadd.f32 %v1463, 1.0
  %v1512 = vadd.f32 %v1465, 1.0
  %v1513 = vadd.f32 %v1467, 1.0
  %v1514 = vadd.f32 %v1469, 1.0
  %v1515 = vadd.f32 %v1471, 1.0
  %v1516 = vadd.f32 %v1473, 1.0
  %v1517 = vadd.f32 %v1475, 1.0
  %v1518 = vadd.f32 %v1477, 1.0
  %v1519 = vadd.f32 %v1479, 1.0
  %v1520 = vadd.f32 %v1481, 1.0
  %v1521 = vadd.f32 %v1483, 1.0
  %v1522 = vadd.f32 %v1485, 1.0
  %v1523 = vadd.f32 %v1487, 1.0
  %v1524 = vadd.f32 %v1489, 1.0
  %v1525 = vadd.f32 %v1491, 1.0
  %v1526 = vadd.f32 %v1493, 1.0
  %v1527 = vadd.f32 %v1495, 1.0
  %v1528 = vadd.f32 %v1497, 1.0
  %v1529 = vadd.f32 %v1499, 1.0
  %v1530 = vadd.f32 %v1501, 1.0
  %v1531 = vadd.f32 %v1503, 1.0
  %v1532 = vadd.f32 %v1505, 1.0
  %v1533 = vadd.f32 %v1507, 1.0
  %v1534 = vadd.f32 %v1509, 1.0
  %v1535 = vrcp.pop %v1510
  %v1536 = vmul.f32 1.0, %v1535
  %v1537 = vrcp.pop %v1511
  %v1538 = vmul.f32 1.0, %v1537
  %v1539 = vrcp.pop %v1512
  %v1540 = vmul.f32 1.0, %v1539
  %v1541 = vrcp.pop %v1513
  %v1542 = vmul.f32 1.0, %v1541
  %v1543 = vrcp.pop %v1514
  %v1544 = vmul.f32 1.0, %v1543
  %v1545 = vrcp.pop %v1515
  %v1546 = vmul.f32 1.0, %v1545
  %v1547 = vrcp.pop %v1516
  %v1548 = vmul.f32 1.0, %v1547
  %v1549 = vrcp.pop %v1517
  %v1550 = vmul.f32 1.0, %v1549
  %v1551 = vrcp.pop %v1518
  %v1552 = vmul.f32 1.0, %v1551
  %v1553 = vrcp.pop %v1519
  %v1554 = vmul.f32 1.0, %v1553
  %v1555 = vrcp.pop %v1520
  %v1556 = vmul.f32 1.0, %v1555
  %v1557 = vrcp.pop %v1521
  %v1558 = vmul.f32 1.0, %v1557
  %v1559 = vrcp.pop %v1522
  %v1560 = vmul.f32 1.0, %v1559
  %v1561 = vrcp.pop %v1523
  %v1562 = vmul.f32 1.0, %v1561
  %v1563 = vrcp.pop %v1524
  %v1564 = vmul.f32 1.0, %v1563
  %v1565 = vrcp.pop %v1525
  %v1566 = vmul.f32 1.0, %v1565
  %v1567 = vrcp.pop %v1526
  %v1568 = vmul.f32 1.0, %v1567
  %v1569 = vrcp.pop %v1527
  %v1570 = vmul.f32 1.0, %v1569
  %v1571 = vrcp.pop %v1528
  %v1572 = vmul.f32 1.0, %v1571
  %v1573 = vrcp.pop %v1529
  %v1574 = vmul.f32 1.0, %v1573
  %v1575 = vrcp.pop %v1530
  %v1576 = vmul.f32 1.0, %v1575
  %v1577 = vrcp.pop %v1531
  %v1578 = vmul.f32 1.0, %v1577
  %v1579 = vrcp.pop %v1532
  %v1580 = vmul.f32 1.0, %v1579
  %v1581 = vrcp.pop %v1533
  %v1582 = vmul.f32 1.0, %v1581
  %v1583 = vrcp.pop %v1534
  %v1584 = vmul.f32 1.0, %v1583
  %vm1585 = vcmask 7168
  %1586 = vst.msk [vmem:[%s11] sm:$0xff] %vm1585, %v1536
  %1587 = vst.msk [vmem:[%s11 + $0x8] sm:$0xff] %vm1585, %v1538
  %1588 = vst.msk [vmem:[%s11 + $0x10] sm:$0xff] %vm1585, %v1540
  %1589 = vst.msk [vmem:[%s11 + $0x18] sm:$0xff] %vm1585, %v1542
  %1590 = vst.msk [vmem:[%s11 + $0x20] sm:$0xff] %vm1585, %v1544
  %1591 = vst.msk [vmem:[%s11 + $0x28] sm:$0xff] %vm1585, %v1546
  %1592 = vst.msk [vmem:[%s11 + $0x30] sm:$0xff] %vm1585, %v1548
  %1593 = vst.msk [vmem:[%s11 + $0x38] sm:$0xff] %vm1585, %v1550
  %1594 = vst.msk [vmem:[%s11 + $0x40] sm:$0xff] %vm1585, %v1552
  %1595 = vst.msk [vmem:[%s11 + $0x48] sm:$0xff] %vm1585, %v1554
  %1596 = vst.msk [vmem:[%s11 + $0x50] sm:$0xff] %vm1585, %v1556
  %1597 = vst.msk [vmem:[%s11 + $0x58] sm:$0xff] %vm1585, %v1558
  %1598 = vst.msk [vmem:[%s11 + $0x60] sm:$0xff] %vm1585, %v1560
  %1599 = vst.msk [vmem:[%s11 + $0x68] sm:$0xff] %vm1585, %v1562
  %1600 = vst.msk [vmem:[%s11 + $0x70] sm:$0xff] %vm1585, %v1564
  %1601 = vst.msk [vmem:[%s11 + $0x78] sm:$0xff] %vm1585, %v1566
  %1602 = vst.msk [vmem:[%s11 + $0x80] sm:$0xff] %vm1585, %v1568
  %1603 = vst.msk [vmem:[%s11 + $0x88] sm:$0xff] %vm1585, %v1570
  %1604 = vst.msk [vmem:[%s11 + $0x90] sm:$0xff] %vm1585, %v1572
  %1605 = vst.msk [vmem:[%s11 + $0x98] sm:$0xff] %vm1585, %v1574
  %1606 = vst.msk [vmem:[%s11 + $0xa0] sm:$0xff] %vm1585, %v1576
  %1607 = vst.msk [vmem:[%s11 + $0xa8] sm:$0xff] %vm1585, %v1578
  %1608 = vst.msk [vmem:[%s11 + $0xb0] sm:$0xff] %vm1585, %v1580
  %1609 = vst.msk [vmem:[%s11 + $0xb8] sm:$0xff] %vm1585, %v1582
  %1610 = vst.msk [vmem:[%s11 + $0xc0] sm:$0xff] %vm1585, %v1584
  // Predicated region
  $region46: #{_glo_forward_impl.1} parent=0 // pred_check
    _
  $region47: #{_glo_forward_impl.1} parent=0 // pred_check_branch
    %1612 = sbr.rel (0) target = $region49
  $region48: #{_glo_forward_impl.1} parent=0 // pred_region
    _
  $region49: #{_glo_forward_impl.1} parent=0 // pred_fallthru
    _
  // Predicated region
  $region50: #{_glo_forward_impl.1} parent=0 // pred_check
    _
  $region51: #{_glo_forward_impl.1} parent=0 // pred_check_branch
    %1614 = sbr.rel (0) target = $region53
  $region52: #{_glo_forward_impl.1} parent=0 // pred_region
    _
  $region53: #{_glo_forward_impl.1} parent=0 // pred_fallthru
    _

</llo_original>
